<compile_context>
chip_gen: v7x
topology: tpu7x:2x2x1
jax: 0.10.0
libtpu: 0.0.40
codegen_flags: <defaults>
</compile_context>

<pallas_src>
import functools
import math

import jax
import jax.numpy as jnp
from jax.experimental import pallas as pl
from jax.experimental.pallas import tpu as pltpu


# ----------------------------------------------------------------------------
# Small "roberta-base"-shaped (but tiny) config
# ----------------------------------------------------------------------------
CFG = dict(
    vocab=64,
    max_pos=32,
    hidden=32,
    heads=2,
    head_dim=16,
    intermediate=64,
    layers=2,
    n_classes=2,
    ln_eps=1e-5,
    pad_idx=1,           # RoBERTa padding_idx
)

_VMEM = pl.BlockSpec(memory_space=pltpu.MemorySpace.VMEM)
_LANE = 128              # lane width used for small-vector packing & the padded logits


# ----------------------------------------------------------------------------
# The fused whole-model kernel
# ----------------------------------------------------------------------------
def fused_roberta_kernel(
    # activations / mask
    emb_ref, mask_ref,
    # packed small f32 vectors: (4,128) misc + (L,8,128) per-layer
    misc_ref, lvec_ref,
    # packed bf16 matmul weights
    wA_ref,      # (L, H, 3H + H + I)  = [Wqkv | Wo | W1]
    w2_ref,      # (L, I, H)
    whead_ref,   # (H, H + 128)        = [pooler_W | out_W zero-padded to 128 lanes]
    # output (lane-dense, padded to 128)
    logits_ref,
    *, B, S, nH, dH, I, L, eps,
):
    H = nH * dH

    def layernorm(h, g, b):
        # f32 statistics (v5e has no bf16 VPU path; also preserves accuracy)
        mu = jnp.mean(h, axis=-1, keepdims=True)
        d = h - mu
        var = jnp.mean(d * d, axis=-1, keepdims=True)
        return d * jax.lax.rsqrt(var + eps) * g + b

    def mm(x, w_bf16):
        # bf16 MXU matmul with f32 accumulation (one cast per consumer chain)
        return jnp.dot(x.astype(jnp.bfloat16), w_bf16,
                       preferred_element_type=jnp.float32)

    # --- unpack the small shared vectors (one vreg) ---
    misc = misc_ref[...]                      # (4, 128) f32
    emb_g    = misc[0:1, 0:H]
    emb_b    = misc[1:2, 0:H]
    pooler_b = misc[2:3, 0:H]
    out_b    = misc[3:4, :]                   # (1, 128), lane-dense

    # --- embedding LayerNorm ---
    x = layernorm(emb_ref[...], emb_g, emb_b)         # (B*S, H) f32
    mask = mask_ref[...]                              # (B, S) additive f32

    # TODO(synk): embedding / attention / FFN / classifier dropout omitted (inference).
    for l in range(L):
        wA = wA_ref[l]                                # (H, 3H + H + I) bf16
        wqkv = wA[:, 0:3 * H]
        wo   = wA[:, 3 * H:4 * H]
        w1   = wA[:, 4 * H:4 * H + I]
        w2   = w2_ref[l]                              # (I, H) bf16

        vec  = lvec_ref[l]                            # (8, 128) f32, one vreg
        bqkv = vec[0:1, 0:3 * H]
        bo   = vec[1:2, 0:H]
        ln1g = vec[2:3, 0:H]
        ln1b = vec[3:4, 0:H]
        b1   = vec[4:5, 0:I]
        b2   = vec[5:6, 0:H]
        ln2g = vec[6:7, 0:H]
        ln2b = vec[7:8, 0:H]

        # ---- fused QKV projection (1/sqrt(dH) already folded into the Q columns) ----
        qkv = mm(x, wqkv) + bqkv                      # (B*S, 3H) f32
        q = qkv[:, 0:H]
        k = qkv[:, H:2 * H]
        v = qkv[:, 2 * H:3 * H]

        # ---- attention, per (batch, head); static dH-wide head slices, all in VMEM ----
        ctx_rows = []
        for b in range(B):
            mb = mask[b:b + 1, :]                     # (1, S)
            heads = []
            for h in range(nH):
                c0, c1 = h * dH, (h + 1) * dH
                q_bh = q[b * S:(b + 1) * S, c0:c1]    # (S, dH)
                k_bh = k[b * S:(b + 1) * S, c0:c1]
                v_bh = v[b * S:(b + 1) * S, c0:c1]
                s = jax.lax.dot_general(
                    q_bh, k_bh, (((1,), (1,)), ((), ())),
                    preferred_element_type=jnp.float32)          # (S, S)
                s = s + mb
                e = jnp.exp(s - jnp.max(s, axis=-1, keepdims=True))
                inv = pl.reciprocal(jnp.sum(e, axis=-1, keepdims=True), approx=True)
                p = e * inv
                heads.append(jnp.dot(p, v_bh, preferred_element_type=jnp.float32))
            ctx_rows.append(jnp.concatenate(heads, axis=1))       # (S, H)
        ctx = jnp.concatenate(ctx_rows, axis=0)                   # (B*S, H)

        # ---- output projection + add & norm ----
        attn_out = mm(ctx, wo) + bo
        x = layernorm(attn_out + x, ln1g, ln1b)

        # ---- FFN (exact erf GELU, matching HF RoBERTa) + add & norm ----
        ffn = mm(x, w1) + b1
        ffn = 0.5 * ffn * (1.0 + jax.lax.erf(ffn * 0.7071067811865476))
        ffn = mm(ffn, w2) + b2
        x = layernorm(ffn + x, ln2g, ln2b)

    # ---- pooler: tanh(Linear(hidden_states[:, 0])); CLS rows via static row slices ----
    cls = jnp.concatenate([x[b * S:b * S + 1, :] for b in range(B)], axis=0)   # (B, H)

    whead = whead_ref[...]                            # (H, H + 128) bf16
    pw = whead[:, 0:H]
    ow = whead[:, H:]                                 # (H, 128) zero-padded classifier W

    pooled = jnp.tanh(mm(cls, pw) + pooler_b)

    # ---- dropout(pooled) is identity at inference; classifier head (lane-dense store) ----
    logits_ref[...] = (mm(pooled, ow) + out_b).astype(logits_ref.dtype)


# ----------------------------------------------------------------------------
# Parameters (deterministic synthetic init, pre-packed into kernel layout)
# ----------------------------------------------------------------------------
def init_params(key, cfg):
    H, I, L, C = cfg["hidden"], cfg["intermediate"], cfg["layers"], cfg["n_classes"]
    nH, dH = cfg["heads"], cfg["head_dim"]
    assert H == nH * dH, "hidden must equal heads * head_dim (contiguous head lanes)"
    assert 3 * H <= _LANE and I <= _LANE and C <= _LANE, "toy-size vector packing only"
    scale = 1.0 / math.sqrt(dH)

    keys = iter(jax.random.split(key, 256))

    # Weights are generated directly in (in, out) kernel layout; a real PyTorch
    # checkpoint's (out, in) weights would be transposed ONCE here at init.
    def w(shape):
        return jax.random.normal(next(keys), shape, jnp.float32) * 0.02

    ones_H = jnp.ones((H,), jnp.float32)

    wA, w2T, lvecs = [], [], []
    for _ in range(L):
        wq = w((H, H)) * scale          # fold 1/sqrt(dH) into Q projection
        wk, wv = w((H, H)), w((H, H))
        wo, w1, w2 = w((H, H)), w((H, I)), w((I, H))
        bq = w((H,)) * scale            # ... and into the Q bias
        bk, bv, bo = w((H,)), w((H,)), w((H,))
        b1, b2 = w((I,)), w((H,))

        wA.append(jnp.concatenate([wq, wk, wv, wo, w1], axis=1))   # (H, 3H + H + I)
        w2T.append(w2)

        vec = jnp.zeros((8, _LANE), jnp.float32)
        vec = vec.at[0, 0:3 * H].set(jnp.concatenate([bq, bk, bv]))
        vec = vec.at[1, 0:H].set(bo)
        vec = vec.at[2, 0:H].set(ones_H)        # ln1 gamma (beta row 3 stays zero)
        vec = vec.at[4, 0:I].set(b1)
        vec = vec.at[5, 0:H].set(b2)
        vec = vec.at[6, 0:H].set(ones_H)        # ln2 gamma (beta row 7 stays zero)
        lvecs.append(vec)

    misc = jnp.zeros((4, _LANE), jnp.float32)
    misc = misc.at[0, 0:H].set(ones_H)          # embedding LN gamma (beta row 1 zero)
    misc = misc.at[2, 0:H].set(w((H,)))         # pooler bias
    misc = misc.at[3, 0:C].set(w((C,)))         # classifier bias (lane-padded)

    pooler_wT = w((H, H))
    out_wT_pad = jnp.zeros((H, _LANE), jnp.float32).at[:, 0:C].set(w((H, C)))
    whead = jnp.concatenate([pooler_wT, out_wT_pad], axis=1)       # (H, H + 128)

    return dict(
        word_emb=w((cfg["vocab"], H)),
        pos_emb=w((cfg["max_pos"], H)),
        type_emb=w((1, H)),
        misc=misc,
        layer_vecs=jnp.stack(lvecs),                        # (L, 8, 128) f32
        wA=jnp.stack(wA).astype(jnp.bfloat16),              # (L, H, 3H+H+I) bf16
        w2T=jnp.stack(w2T).astype(jnp.bfloat16),            # (L, I, H) bf16
        w_head=whead.astype(jnp.bfloat16),                  # (H, H+128) bf16
    )


# ----------------------------------------------------------------------------
# Forward pass (matches ROBERTAClassifier.forward: roberta -> pooler -> drop -> out)
# ----------------------------------------------------------------------------
def roberta_classifier_forward(params, input_ids, attention_mask, cfg=CFG):
    B, S = input_ids.shape
    H, nH, dH = cfg["hidden"], cfg["heads"], cfg["head_dim"]
    I, L, C = cfg["intermediate"], cfg["layers"], cfg["n_classes"]
    eps, pad = cfg["ln_eps"], cfg["pad_idx"]
    assert H == nH * dH

    # --- embedding gathers (glue, outside the kernel) ---
    not_pad = (input_ids != pad).astype(jnp.int32)
    position_ids = jnp.cumsum(not_pad, axis=1) * not_pad + pad   # RoBERTa position ids
    emb = (
        params["word_emb"][input_ids]
        + params["pos_emb"][position_ids]
        + params["type_emb"][0]
    ).reshape(B * S, H).astype(jnp.float32)

    # additive attention mask, (B, S): 0 for real tokens, -1e9 for padding
    mask_add = (1.0 - attention_mask.astype(jnp.float32)) * -1e9

    kernel = functools.partial(
        fused_roberta_kernel, B=B, S=S, nH=nH, dH=dH, I=I, L=L, eps=eps)

    # NOTE: whole model fits comfortably in VMEM at this size, so one grid-less call
    # (7 packed input DMAs, one lane-dense output) is optimal.  Scaling to real
    # roberta-base needs a layer grid axis (double-buffered weight streaming), a
    # "parallel" token/batch axis for v7x's two TensorCores, and a VMEM budget
    # against 64 MiB/TC.
    logits_pad = pl.pallas_call(
        kernel,
        out_shape=jax.ShapeDtypeStruct((B, _LANE), jnp.float32),   # lane-dense output
        in_specs=[_VMEM] * 7,
        out_specs=_VMEM,
        compiler_params=pltpu.CompilerParams(vmem_limit_bytes=32 * 1024 * 1024),
    )(
        emb, mask_add,
        params["misc"], params["layer_vecs"],
        params["wA"], params["w2T"], params["w_head"],
    )
    return logits_pad[:, :C]


# ----------------------------------------------------------------------------
# Main
# ----------------------------------------------------------------------------
if __name__ == "__main__":
    key = jax.random.PRNGKey(0)
    pkey, ikey = jax.random.split(key)

    params = init_params(pkey, CFG)

    B, S = 2, 8
    input_ids = jax.random.randint(ikey, (B, S), 2, CFG["vocab"], dtype=jnp.int32)
    # pad out the tail of the second sequence
    input_ids = input_ids.at[1, 6:].set(CFG["pad_idx"])
    attention_mask = (input_ids != CFG["pad_idx"]).astype(jnp.int32)

    fwd = jax.jit(functools.partial(roberta_classifier_forward, cfg=CFG))
    logits = fwd(params, input_ids, attention_mask)
    jax.block_until_ready(logits)

    assert logits.shape == (B, CFG["n_classes"])
    assert bool(jnp.all(jnp.isfinite(logits)))
    print("KERNEL_OK")
</pallas_src>

<mosaic_0001>
module attributes {stable_mosaic.version = 11 : i64} {
  func.func @fused_roberta_kernel(%arg0: memref<16x32xf32, #tpu.memory_space<vmem>>, %arg1: memref<2x8xf32, #tpu.memory_space<vmem>>, %arg2: memref<4x128xf32, #tpu.memory_space<vmem>>, %arg3: memref<2x8x128xf32, #tpu.memory_space<vmem>>, %arg4: memref<2x32x192xbf16, #tpu.memory_space<vmem>>, %arg5: memref<2x64x32xbf16, #tpu.memory_space<vmem>>, %arg6: memref<32x160xbf16, #tpu.memory_space<vmem>>, %arg7: memref<2x128xf32, #tpu.memory_space<vmem>>) attributes {dimension_semantics = [], scalar_prefetch = 0 : i64, scratch_operands = 0 : i64, tpu.core_type = #tpu.core_type<tc>} {
    %c0 = arith.constant 0 : index
    %c0_0 = arith.constant 0 : index
    %0 = vector.load %arg2[%c0, %c0_0] : memref<4x128xf32, #tpu.memory_space<vmem>>, vector<4x128xf32>
    %1 = vector.extract_strided_slice %0 {offsets = [0, 0], sizes = [1, 32], strides = [1, 1]} : vector<4x128xf32> to vector<1x32xf32>
    %2 = vector.extract_strided_slice %0 {offsets = [1, 0], sizes = [1, 32], strides = [1, 1]} : vector<4x128xf32> to vector<1x32xf32>
    %3 = vector.extract_strided_slice %0 {offsets = [2, 0], sizes = [1, 32], strides = [1, 1]} : vector<4x128xf32> to vector<1x32xf32>
    %4 = vector.extract_strided_slice %0 {offsets = [3, 0], sizes = [1, 128], strides = [1, 1]} : vector<4x128xf32> to vector<1x128xf32>
    %c0_1 = arith.constant 0 : index
    %c0_2 = arith.constant 0 : index
    %5 = vector.load %arg0[%c0_1, %c0_2] : memref<16x32xf32, #tpu.memory_space<vmem>>, vector<16x32xf32>
    %cst = arith.constant dense<0.000000e+00> : vector<16xf32>
    %6 = vector.multi_reduction <add>, %5, %cst [1] : vector<16x32xf32> to vector<16xf32>
    %7 = vector.shape_cast %6 : vector<16xf32> to vector<16x1xf32>
    %cst_3 = arith.constant 3.200000e+01 : f32
    %8 = vector.broadcast %cst_3 : f32 to vector<16x1xf32>
    %9 = arith.divf %7, %8 : vector<16x1xf32>
    %10 = vector.broadcast %9 : vector<16x1xf32> to vector<16x32xf32>
    %11 = arith.subf %5, %10 : vector<16x32xf32>
    %12 = arith.mulf %11, %11 : vector<16x32xf32>
    %cst_4 = arith.constant dense<0.000000e+00> : vector<16xf32>
    %13 = vector.multi_reduction <add>, %12, %cst_4 [1] : vector<16x32xf32> to vector<16xf32>
    %14 = vector.shape_cast %13 : vector<16xf32> to vector<16x1xf32>
    %cst_5 = arith.constant 3.200000e+01 : f32
    %15 = vector.broadcast %cst_5 : f32 to vector<16x1xf32>
    %16 = arith.divf %14, %15 : vector<16x1xf32>
    %cst_6 = arith.constant 9.99999974E-6 : f32
    %17 = vector.broadcast %cst_6 : f32 to vector<16x1xf32>
    %18 = arith.addf %16, %17 : vector<16x1xf32>
    %19 = math.rsqrt %18 : vector<16x1xf32>
    %20 = vector.broadcast %19 : vector<16x1xf32> to vector<16x32xf32>
    %21 = arith.mulf %11, %20 : vector<16x32xf32>
    %22 = vector.broadcast %1 : vector<1x32xf32> to vector<16x32xf32>
    %23 = arith.mulf %21, %22 : vector<16x32xf32>
    %24 = vector.broadcast %2 : vector<1x32xf32> to vector<16x32xf32>
    %25 = arith.addf %23, %24 : vector<16x32xf32>
    %c0_7 = arith.constant 0 : index
    %c0_8 = arith.constant 0 : index
    %26 = vector.load %arg1[%c0_7, %c0_8] : memref<2x8xf32, #tpu.memory_space<vmem>>, vector<2x8xf32>
    %c0_9 = arith.constant 0 : index
    %c0_10 = arith.constant 0 : index
    %c0_11 = arith.constant 0 : index
    %27 = vector.load %arg4[%c0_9, %c0_10, %c0_11] : memref<2x32x192xbf16, #tpu.memory_space<vmem>>, vector<1x32x192xbf16>
    %28 = vector.shape_cast %27 : vector<1x32x192xbf16> to vector<32x192xbf16>
    %29 = vector.extract_strided_slice %28 {offsets = [0, 0], sizes = [32, 96], strides = [1, 1]} : vector<32x192xbf16> to vector<32x96xbf16>
    %30 = vector.extract_strided_slice %28 {offsets = [0, 96], sizes = [32, 32], strides = [1, 1]} : vector<32x192xbf16> to vector<32x32xbf16>
    %31 = vector.extract_strided_slice %28 {offsets = [0, 128], sizes = [32, 64], strides = [1, 1]} : vector<32x192xbf16> to vector<32x64xbf16>
    %c0_12 = arith.constant 0 : index
    %c0_13 = arith.constant 0 : index
    %c0_14 = arith.constant 0 : index
    %32 = vector.load %arg5[%c0_12, %c0_13, %c0_14] : memref<2x64x32xbf16, #tpu.memory_space<vmem>>, vector<1x64x32xbf16>
    %33 = vector.shape_cast %32 : vector<1x64x32xbf16> to vector<64x32xbf16>
    %c0_15 = arith.constant 0 : index
    %c0_16 = arith.constant 0 : index
    %c0_17 = arith.constant 0 : index
    %34 = vector.load %arg3[%c0_15, %c0_16, %c0_17] : memref<2x8x128xf32, #tpu.memory_space<vmem>>, vector<1x8x128xf32>
    %35 = vector.shape_cast %34 : vector<1x8x128xf32> to vector<8x128xf32>
    %36 = vector.extract_strided_slice %35 {offsets = [0, 0], sizes = [1, 96], strides = [1, 1]} : vector<8x128xf32> to vector<1x96xf32>
    %37 = vector.extract_strided_slice %35 {offsets = [1, 0], sizes = [1, 32], strides = [1, 1]} : vector<8x128xf32> to vector<1x32xf32>
    %38 = vector.extract_strided_slice %35 {offsets = [2, 0], sizes = [1, 32], strides = [1, 1]} : vector<8x128xf32> to vector<1x32xf32>
    %39 = vector.extract_strided_slice %35 {offsets = [3, 0], sizes = [1, 32], strides = [1, 1]} : vector<8x128xf32> to vector<1x32xf32>
    %40 = vector.extract_strided_slice %35 {offsets = [4, 0], sizes = [1, 64], strides = [1, 1]} : vector<8x128xf32> to vector<1x64xf32>
    %41 = vector.extract_strided_slice %35 {offsets = [5, 0], sizes = [1, 32], strides = [1, 1]} : vector<8x128xf32> to vector<1x32xf32>
    %42 = vector.extract_strided_slice %35 {offsets = [6, 0], sizes = [1, 32], strides = [1, 1]} : vector<8x128xf32> to vector<1x32xf32>
    %43 = vector.extract_strided_slice %35 {offsets = [7, 0], sizes = [1, 32], strides = [1, 1]} : vector<8x128xf32> to vector<1x32xf32>
    %44 = arith.truncf %25 : vector<16x32xf32> to vector<16x32xbf16>
    %cst_18 = arith.constant dense<0.000000e+00> : vector<16x96xf32>
    %45 = tpu.matmul %44, %29, %cst_18 {dimension_numbers = #tpu.dot_dimension_numbers<[1], [0], [0], [1], [0, 0, 1, 1], [], []>} : vector<16x32xbf16>, vector<32x96xbf16>, vector<16x96xf32> -> vector<16x96xf32>
    %46 = vector.broadcast %36 : vector<1x96xf32> to vector<16x96xf32>
    %47 = arith.addf %45, %46 : vector<16x96xf32>
    %48 = vector.extract_strided_slice %47 {offsets = [0, 0], sizes = [16, 32], strides = [1, 1]} : vector<16x96xf32> to vector<16x32xf32>
    %49 = vector.extract_strided_slice %47 {offsets = [0, 32], sizes = [16, 32], strides = [1, 1]} : vector<16x96xf32> to vector<16x32xf32>
    %50 = vector.extract_strided_slice %47 {offsets = [0, 64], sizes = [16, 32], strides = [1, 1]} : vector<16x96xf32> to vector<16x32xf32>
    %51 = vector.extract_strided_slice %26 {offsets = [0, 0], sizes = [1, 8], strides = [1, 1]} : vector<2x8xf32> to vector<1x8xf32>
    %52 = vector.extract_strided_slice %48 {offsets = [0, 0], sizes = [8, 16], strides = [1, 1]} : vector<16x32xf32> to vector<8x16xf32>
    %53 = vector.extract_strided_slice %49 {offsets = [0, 0], sizes = [8, 16], strides = [1, 1]} : vector<16x32xf32> to vector<8x16xf32>
    %54 = vector.extract_strided_slice %50 {offsets = [0, 0], sizes = [8, 16], strides = [1, 1]} : vector<16x32xf32> to vector<8x16xf32>
    %cst_19 = arith.constant dense<0.000000e+00> : vector<8x8xf32>
    %55 = tpu.matmul %52, %53, %cst_19 {dimension_numbers = #tpu.dot_dimension_numbers<[1], [1], [0], [0], [0, 0, 1, 0], [], []>} : vector<8x16xf32>, vector<8x16xf32>, vector<8x8xf32> -> vector<8x8xf32>
    %56 = vector.broadcast %51 : vector<1x8xf32> to vector<8x8xf32>
    %57 = arith.addf %55, %56 : vector<8x8xf32>
    %cst_20 = arith.constant dense<0xFF800000> : vector<8xf32>
    %58 = vector.multi_reduction <maximumf>, %57, %cst_20 [1] : vector<8x8xf32> to vector<8xf32>
    %59 = vector.shape_cast %58 : vector<8xf32> to vector<8x1xf32>
    %60 = vector.broadcast %59 : vector<8x1xf32> to vector<8x8xf32>
    %61 = arith.subf %57, %60 : vector<8x8xf32>
    %62 = math.exp %61 : vector<8x8xf32>
    %cst_21 = arith.constant dense<0.000000e+00> : vector<8xf32>
    %63 = vector.multi_reduction <add>, %62, %cst_21 [1] : vector<8x8xf32> to vector<8xf32>
    %64 = vector.shape_cast %63 : vector<8xf32> to vector<8x1xf32>
    %65 = tpu.reciprocal %64 {approx = true} : vector<8x1xf32> -> vector<8x1xf32>
    %66 = vector.broadcast %65 : vector<8x1xf32> to vector<8x8xf32>
    %67 = arith.mulf %62, %66 : vector<8x8xf32>
    %cst_22 = arith.constant dense<0.000000e+00> : vector<8x16xf32>
    %68 = tpu.matmul %67, %54, %cst_22 {dimension_numbers = #tpu.dot_dimension_numbers<[1], [0], [0], [1], [0, 0, 1, 1], [], []>} : vector<8x8xf32>, vector<8x16xf32>, vector<8x16xf32> -> vector<8x16xf32>
    %69 = vector.extract_strided_slice %48 {offsets = [0, 16], sizes = [8, 16], strides = [1, 1]} : vector<16x32xf32> to vector<8x16xf32>
    %70 = vector.extract_strided_slice %49 {offsets = [0, 16], sizes = [8, 16], strides = [1, 1]} : vector<16x32xf32> to vector<8x16xf32>
    %71 = vector.extract_strided_slice %50 {offsets = [0, 16], sizes = [8, 16], strides = [1, 1]} : vector<16x32xf32> to vector<8x16xf32>
    %cst_23 = arith.constant dense<0.000000e+00> : vector<8x8xf32>
    %72 = tpu.matmul %69, %70, %cst_23 {dimension_numbers = #tpu.dot_dimension_numbers<[1], [1], [0], [0], [0, 0, 1, 0], [], []>} : vector<8x16xf32>, vector<8x16xf32>, vector<8x8xf32> -> vector<8x8xf32>
    %73 = vector.broadcast %51 : vector<1x8xf32> to vector<8x8xf32>
    %74 = arith.addf %72, %73 : vector<8x8xf32>
    %cst_24 = arith.constant dense<0xFF800000> : vector<8xf32>
    %75 = vector.multi_reduction <maximumf>, %74, %cst_24 [1] : vector<8x8xf32> to vector<8xf32>
    %76 = vector.shape_cast %75 : vector<8xf32> to vector<8x1xf32>
    %77 = vector.broadcast %76 : vector<8x1xf32> to vector<8x8xf32>
    %78 = arith.subf %74, %77 : vector<8x8xf32>
    %79 = math.exp %78 : vector<8x8xf32>
    %cst_25 = arith.constant dense<0.000000e+00> : vector<8xf32>
    %80 = vector.multi_reduction <add>, %79, %cst_25 [1] : vector<8x8xf32> to vector<8xf32>
    %81 = vector.shape_cast %80 : vector<8xf32> to vector<8x1xf32>
    %82 = tpu.reciprocal %81 {approx = true} : vector<8x1xf32> -> vector<8x1xf32>
    %83 = vector.broadcast %82 : vector<8x1xf32> to vector<8x8xf32>
    %84 = arith.mulf %79, %83 : vector<8x8xf32>
    %cst_26 = arith.constant dense<0.000000e+00> : vector<8x16xf32>
    %85 = tpu.matmul %84, %71, %cst_26 {dimension_numbers = #tpu.dot_dimension_numbers<[1], [0], [0], [1], [0, 0, 1, 1], [], []>} : vector<8x8xf32>, vector<8x16xf32>, vector<8x16xf32> -> vector<8x16xf32>
    %86 = tpu.concatenate %68, %85 in 1 : vector<8x16xf32>, vector<8x16xf32> -> vector<8x32xf32>
    %87 = vector.extract_strided_slice %26 {offsets = [1, 0], sizes = [1, 8], strides = [1, 1]} : vector<2x8xf32> to vector<1x8xf32>
    %88 = vector.extract_strided_slice %48 {offsets = [8, 0], sizes = [8, 16], strides = [1, 1]} : vector<16x32xf32> to vector<8x16xf32>
    %89 = vector.extract_strided_slice %49 {offsets = [8, 0], sizes = [8, 16], strides = [1, 1]} : vector<16x32xf32> to vector<8x16xf32>
    %90 = vector.extract_strided_slice %50 {offsets = [8, 0], sizes = [8, 16], strides = [1, 1]} : vector<16x32xf32> to vector<8x16xf32>
    %cst_27 = arith.constant dense<0.000000e+00> : vector<8x8xf32>
    %91 = tpu.matmul %88, %89, %cst_27 {dimension_numbers = #tpu.dot_dimension_numbers<[1], [1], [0], [0], [0, 0, 1, 0], [], []>} : vector<8x16xf32>, vector<8x16xf32>, vector<8x8xf32> -> vector<8x8xf32>
    %92 = vector.broadcast %87 : vector<1x8xf32> to vector<8x8xf32>
    %93 = arith.addf %91, %92 : vector<8x8xf32>
    %cst_28 = arith.constant dense<0xFF800000> : vector<8xf32>
    %94 = vector.multi_reduction <maximumf>, %93, %cst_28 [1] : vector<8x8xf32> to vector<8xf32>
    %95 = vector.shape_cast %94 : vector<8xf32> to vector<8x1xf32>
    %96 = vector.broadcast %95 : vector<8x1xf32> to vector<8x8xf32>
    %97 = arith.subf %93, %96 : vector<8x8xf32>
    %98 = math.exp %97 : vector<8x8xf32>
    %cst_29 = arith.constant dense<0.000000e+00> : vector<8xf32>
    %99 = vector.multi_reduction <add>, %98, %cst_29 [1] : vector<8x8xf32> to vector<8xf32>
    %100 = vector.shape_cast %99 : vector<8xf32> to vector<8x1xf32>
    %101 = tpu.reciprocal %100 {approx = true} : vector<8x1xf32> -> vector<8x1xf32>
    %102 = vector.broadcast %101 : vector<8x1xf32> to vector<8x8xf32>
    %103 = arith.mulf %98, %102 : vector<8x8xf32>
    %cst_30 = arith.constant dense<0.000000e+00> : vector<8x16xf32>
    %104 = tpu.matmul %103, %90, %cst_30 {dimension_numbers = #tpu.dot_dimension_numbers<[1], [0], [0], [1], [0, 0, 1, 1], [], []>} : vector<8x8xf32>, vector<8x16xf32>, vector<8x16xf32> -> vector<8x16xf32>
    %105 = vector.extract_strided_slice %48 {offsets = [8, 16], sizes = [8, 16], strides = [1, 1]} : vector<16x32xf32> to vector<8x16xf32>
    %106 = vector.extract_strided_slice %49 {offsets = [8, 16], sizes = [8, 16], strides = [1, 1]} : vector<16x32xf32> to vector<8x16xf32>
    %107 = vector.extract_strided_slice %50 {offsets = [8, 16], sizes = [8, 16], strides = [1, 1]} : vector<16x32xf32> to vector<8x16xf32>
    %cst_31 = arith.constant dense<0.000000e+00> : vector<8x8xf32>
    %108 = tpu.matmul %105, %106, %cst_31 {dimension_numbers = #tpu.dot_dimension_numbers<[1], [1], [0], [0], [0, 0, 1, 0], [], []>} : vector<8x16xf32>, vector<8x16xf32>, vector<8x8xf32> -> vector<8x8xf32>
    %109 = vector.broadcast %87 : vector<1x8xf32> to vector<8x8xf32>
    %110 = arith.addf %108, %109 : vector<8x8xf32>
    %cst_32 = arith.constant dense<0xFF800000> : vector<8xf32>
    %111 = vector.multi_reduction <maximumf>, %110, %cst_32 [1] : vector<8x8xf32> to vector<8xf32>
    %112 = vector.shape_cast %111 : vector<8xf32> to vector<8x1xf32>
    %113 = vector.broadcast %112 : vector<8x1xf32> to vector<8x8xf32>
    %114 = arith.subf %110, %113 : vector<8x8xf32>
    %115 = math.exp %114 : vector<8x8xf32>
    %cst_33 = arith.constant dense<0.000000e+00> : vector<8xf32>
    %116 = vector.multi_reduction <add>, %115, %cst_33 [1] : vector<8x8xf32> to vector<8xf32>
    %117 = vector.shape_cast %116 : vector<8xf32> to vector<8x1xf32>
    %118 = tpu.reciprocal %117 {approx = true} : vector<8x1xf32> -> vector<8x1xf32>
    %119 = vector.broadcast %118 : vector<8x1xf32> to vector<8x8xf32>
    %120 = arith.mulf %115, %119 : vector<8x8xf32>
    %cst_34 = arith.constant dense<0.000000e+00> : vector<8x16xf32>
    %121 = tpu.matmul %120, %107, %cst_34 {dimension_numbers = #tpu.dot_dimension_numbers<[1], [0], [0], [1], [0, 0, 1, 1], [], []>} : vector<8x8xf32>, vector<8x16xf32>, vector<8x16xf32> -> vector<8x16xf32>
    %122 = tpu.concatenate %104, %121 in 1 : vector<8x16xf32>, vector<8x16xf32> -> vector<8x32xf32>
    %123 = tpu.concatenate %86, %122 in 0 : vector<8x32xf32>, vector<8x32xf32> -> vector<16x32xf32>
    %124 = arith.truncf %123 : vector<16x32xf32> to vector<16x32xbf16>
    %cst_35 = arith.constant dense<0.000000e+00> : vector<16x32xf32>
    %125 = tpu.matmul %124, %30, %cst_35 {dimension_numbers = #tpu.dot_dimension_numbers<[1], [0], [0], [1], [0, 0, 1, 1], [], []>} : vector<16x32xbf16>, vector<32x32xbf16>, vector<16x32xf32> -> vector<16x32xf32>
    %126 = vector.broadcast %37 : vector<1x32xf32> to vector<16x32xf32>
    %127 = arith.addf %125, %126 : vector<16x32xf32>
    %128 = arith.addf %127, %25 : vector<16x32xf32>
    %cst_36 = arith.constant dense<0.000000e+00> : vector<16xf32>
    %129 = vector.multi_reduction <add>, %128, %cst_36 [1] : vector<16x32xf32> to vector<16xf32>
    %130 = vector.shape_cast %129 : vector<16xf32> to vector<16x1xf32>
    %cst_37 = arith.constant 3.200000e+01 : f32
    %131 = vector.broadcast %cst_37 : f32 to vector<16x1xf32>
    %132 = arith.divf %130, %131 : vector<16x1xf32>
    %133 = vector.broadcast %132 : vector<16x1xf32> to vector<16x32xf32>
    %134 = arith.subf %128, %133 : vector<16x32xf32>
    %135 = arith.mulf %134, %134 : vector<16x32xf32>
    %cst_38 = arith.constant dense<0.000000e+00> : vector<16xf32>
    %136 = vector.multi_reduction <add>, %135, %cst_38 [1] : vector<16x32xf32> to vector<16xf32>
    %137 = vector.shape_cast %136 : vector<16xf32> to vector<16x1xf32>
    %cst_39 = arith.constant 3.200000e+01 : f32
    %138 = vector.broadcast %cst_39 : f32 to vector<16x1xf32>
    %139 = arith.divf %137, %138 : vector<16x1xf32>
    %cst_40 = arith.constant 9.99999974E-6 : f32
    %140 = vector.broadcast %cst_40 : f32 to vector<16x1xf32>
    %141 = arith.addf %139, %140 : vector<16x1xf32>
    %142 = math.rsqrt %141 : vector<16x1xf32>
    %143 = vector.broadcast %142 : vector<16x1xf32> to vector<16x32xf32>
    %144 = arith.mulf %134, %143 : vector<16x32xf32>
    %145 = vector.broadcast %38 : vector<1x32xf32> to vector<16x32xf32>
    %146 = arith.mulf %144, %145 : vector<16x32xf32>
    %147 = vector.broadcast %39 : vector<1x32xf32> to vector<16x32xf32>
    %148 = arith.addf %146, %147 : vector<16x32xf32>
    %149 = arith.truncf %148 : vector<16x32xf32> to vector<16x32xbf16>
    %cst_41 = arith.constant dense<0.000000e+00> : vector<16x64xf32>
    %150 = tpu.matmul %149, %31, %cst_41 {dimension_numbers = #tpu.dot_dimension_numbers<[1], [0], [0], [1], [0, 0, 1, 1], [], []>} : vector<16x32xbf16>, vector<32x64xbf16>, vector<16x64xf32> -> vector<16x64xf32>
    %151 = vector.broadcast %40 : vector<1x64xf32> to vector<16x64xf32>
    %152 = arith.addf %150, %151 : vector<16x64xf32>
    %cst_42 = arith.constant 5.000000e-01 : f32
    %153 = vector.broadcast %cst_42 : f32 to vector<16x64xf32>
    %154 = arith.mulf %153, %152 : vector<16x64xf32>
    %cst_43 = arith.constant 0.707106769 : f32
    %155 = vector.broadcast %cst_43 : f32 to vector<16x64xf32>
    %156 = arith.mulf %152, %155 : vector<16x64xf32>
    %157 = math.erf %156 : vector<16x64xf32>
    %cst_44 = arith.constant 1.000000e+00 : f32
    %158 = vector.broadcast %cst_44 : f32 to vector<16x64xf32>
    %159 = arith.addf %158, %157 : vector<16x64xf32>
    %160 = arith.mulf %154, %159 : vector<16x64xf32>
    %161 = arith.truncf %160 : vector<16x64xf32> to vector<16x64xbf16>
    %cst_45 = arith.constant dense<0.000000e+00> : vector<16x32xf32>
    %162 = tpu.matmul %161, %33, %cst_45 {dimension_numbers = #tpu.dot_dimension_numbers<[1], [0], [0], [1], [0, 0, 1, 1], [], []>} : vector<16x64xbf16>, vector<64x32xbf16>, vector<16x32xf32> -> vector<16x32xf32>
    %163 = vector.broadcast %41 : vector<1x32xf32> to vector<16x32xf32>
    %164 = arith.addf %162, %163 : vector<16x32xf32>
    %165 = arith.addf %164, %148 : vector<16x32xf32>
    %cst_46 = arith.constant dense<0.000000e+00> : vector<16xf32>
    %166 = vector.multi_reduction <add>, %165, %cst_46 [1] : vector<16x32xf32> to vector<16xf32>
    %167 = vector.shape_cast %166 : vector<16xf32> to vector<16x1xf32>
    %cst_47 = arith.constant 3.200000e+01 : f32
    %168 = vector.broadcast %cst_47 : f32 to vector<16x1xf32>
    %169 = arith.divf %167, %168 : vector<16x1xf32>
    %170 = vector.broadcast %169 : vector<16x1xf32> to vector<16x32xf32>
    %171 = arith.subf %165, %170 : vector<16x32xf32>
    %172 = arith.mulf %171, %171 : vector<16x32xf32>
    %cst_48 = arith.constant dense<0.000000e+00> : vector<16xf32>
    %173 = vector.multi_reduction <add>, %172, %cst_48 [1] : vector<16x32xf32> to vector<16xf32>
    %174 = vector.shape_cast %173 : vector<16xf32> to vector<16x1xf32>
    %cst_49 = arith.constant 3.200000e+01 : f32
    %175 = vector.broadcast %cst_49 : f32 to vector<16x1xf32>
    %176 = arith.divf %174, %175 : vector<16x1xf32>
    %cst_50 = arith.constant 9.99999974E-6 : f32
    %177 = vector.broadcast %cst_50 : f32 to vector<16x1xf32>
    %178 = arith.addf %176, %177 : vector<16x1xf32>
    %179 = math.rsqrt %178 : vector<16x1xf32>
    %180 = vector.broadcast %179 : vector<16x1xf32> to vector<16x32xf32>
    %181 = arith.mulf %171, %180 : vector<16x32xf32>
    %182 = vector.broadcast %42 : vector<1x32xf32> to vector<16x32xf32>
    %183 = arith.mulf %181, %182 : vector<16x32xf32>
    %184 = vector.broadcast %43 : vector<1x32xf32> to vector<16x32xf32>
    %185 = arith.addf %183, %184 : vector<16x32xf32>
    %c1 = arith.constant 1 : index
    %c0_51 = arith.constant 0 : index
    %c0_52 = arith.constant 0 : index
    %186 = vector.load %arg4[%c1, %c0_51, %c0_52] : memref<2x32x192xbf16, #tpu.memory_space<vmem>>, vector<1x32x192xbf16>
    %187 = vector.shape_cast %186 : vector<1x32x192xbf16> to vector<32x192xbf16>
    %188 = vector.extract_strided_slice %187 {offsets = [0, 0], sizes = [32, 96], strides = [1, 1]} : vector<32x192xbf16> to vector<32x96xbf16>
    %189 = vector.extract_strided_slice %187 {offsets = [0, 96], sizes = [32, 32], strides = [1, 1]} : vector<32x192xbf16> to vector<32x32xbf16>
    %190 = vector.extract_strided_slice %187 {offsets = [0, 128], sizes = [32, 64], strides = [1, 1]} : vector<32x192xbf16> to vector<32x64xbf16>
    %c1_53 = arith.constant 1 : index
    %c0_54 = arith.constant 0 : index
    %c0_55 = arith.constant 0 : index
    %191 = vector.load %arg5[%c1_53, %c0_54, %c0_55] : memref<2x64x32xbf16, #tpu.memory_space<vmem>>, vector<1x64x32xbf16>
    %192 = vector.shape_cast %191 : vector<1x64x32xbf16> to vector<64x32xbf16>
    %c1_56 = arith.constant 1 : index
    %c0_57 = arith.constant 0 : index
    %c0_58 = arith.constant 0 : index
    %193 = vector.load %arg3[%c1_56, %c0_57, %c0_58] : memref<2x8x128xf32, #tpu.memory_space<vmem>>, vector<1x8x128xf32>
    %194 = vector.shape_cast %193 : vector<1x8x128xf32> to vector<8x128xf32>
    %195 = vector.extract_strided_slice %194 {offsets = [0, 0], sizes = [1, 96], strides = [1, 1]} : vector<8x128xf32> to vector<1x96xf32>
    %196 = vector.extract_strided_slice %194 {offsets = [1, 0], sizes = [1, 32], strides = [1, 1]} : vector<8x128xf32> to vector<1x32xf32>
    %197 = vector.extract_strided_slice %194 {offsets = [2, 0], sizes = [1, 32], strides = [1, 1]} : vector<8x128xf32> to vector<1x32xf32>
    %198 = vector.extract_strided_slice %194 {offsets = [3, 0], sizes = [1, 32], strides = [1, 1]} : vector<8x128xf32> to vector<1x32xf32>
    %199 = vector.extract_strided_slice %194 {offsets = [4, 0], sizes = [1, 64], strides = [1, 1]} : vector<8x128xf32> to vector<1x64xf32>
    %200 = vector.extract_strided_slice %194 {offsets = [5, 0], sizes = [1, 32], strides = [1, 1]} : vector<8x128xf32> to vector<1x32xf32>
    %201 = vector.extract_strided_slice %194 {offsets = [6, 0], sizes = [1, 32], strides = [1, 1]} : vector<8x128xf32> to vector<1x32xf32>
    %202 = vector.extract_strided_slice %194 {offsets = [7, 0], sizes = [1, 32], strides = [1, 1]} : vector<8x128xf32> to vector<1x32xf32>
    %203 = arith.truncf %185 : vector<16x32xf32> to vector<16x32xbf16>
    %cst_59 = arith.constant dense<0.000000e+00> : vector<16x96xf32>
    %204 = tpu.matmul %203, %188, %cst_59 {dimension_numbers = #tpu.dot_dimension_numbers<[1], [0], [0], [1], [0, 0, 1, 1], [], []>} : vector<16x32xbf16>, vector<32x96xbf16>, vector<16x96xf32> -> vector<16x96xf32>
    %205 = vector.broadcast %195 : vector<1x96xf32> to vector<16x96xf32>
    %206 = arith.addf %204, %205 : vector<16x96xf32>
    %207 = vector.extract_strided_slice %206 {offsets = [0, 0], sizes = [16, 32], strides = [1, 1]} : vector<16x96xf32> to vector<16x32xf32>
    %208 = vector.extract_strided_slice %206 {offsets = [0, 32], sizes = [16, 32], strides = [1, 1]} : vector<16x96xf32> to vector<16x32xf32>
    %209 = vector.extract_strided_slice %206 {offsets = [0, 64], sizes = [16, 32], strides = [1, 1]} : vector<16x96xf32> to vector<16x32xf32>
    %210 = vector.extract_strided_slice %26 {offsets = [0, 0], sizes = [1, 8], strides = [1, 1]} : vector<2x8xf32> to vector<1x8xf32>
    %211 = vector.extract_strided_slice %207 {offsets = [0, 0], sizes = [8, 16], strides = [1, 1]} : vector<16x32xf32> to vector<8x16xf32>
    %212 = vector.extract_strided_slice %208 {offsets = [0, 0], sizes = [8, 16], strides = [1, 1]} : vector<16x32xf32> to vector<8x16xf32>
    %213 = vector.extract_strided_slice %209 {offsets = [0, 0], sizes = [8, 16], strides = [1, 1]} : vector<16x32xf32> to vector<8x16xf32>
    %cst_60 = arith.constant dense<0.000000e+00> : vector<8x8xf32>
    %214 = tpu.matmul %211, %212, %cst_60 {dimension_numbers = #tpu.dot_dimension_numbers<[1], [1], [0], [0], [0, 0, 1, 0], [], []>} : vector<8x16xf32>, vector<8x16xf32>, vector<8x8xf32> -> vector<8x8xf32>
    %215 = vector.broadcast %210 : vector<1x8xf32> to vector<8x8xf32>
    %216 = arith.addf %214, %215 : vector<8x8xf32>
    %cst_61 = arith.constant dense<0xFF800000> : vector<8xf32>
    %217 = vector.multi_reduction <maximumf>, %216, %cst_61 [1] : vector<8x8xf32> to vector<8xf32>
    %218 = vector.shape_cast %217 : vector<8xf32> to vector<8x1xf32>
    %219 = vector.broadcast %218 : vector<8x1xf32> to vector<8x8xf32>
    %220 = arith.subf %216, %219 : vector<8x8xf32>
    %221 = math.exp %220 : vector<8x8xf32>
    %cst_62 = arith.constant dense<0.000000e+00> : vector<8xf32>
    %222 = vector.multi_reduction <add>, %221, %cst_62 [1] : vector<8x8xf32> to vector<8xf32>
    %223 = vector.shape_cast %222 : vector<8xf32> to vector<8x1xf32>
    %224 = tpu.reciprocal %223 {approx = true} : vector<8x1xf32> -> vector<8x1xf32>
    %225 = vector.broadcast %224 : vector<8x1xf32> to vector<8x8xf32>
    %226 = arith.mulf %221, %225 : vector<8x8xf32>
    %cst_63 = arith.constant dense<0.000000e+00> : vector<8x16xf32>
    %227 = tpu.matmul %226, %213, %cst_63 {dimension_numbers = #tpu.dot_dimension_numbers<[1], [0], [0], [1], [0, 0, 1, 1], [], []>} : vector<8x8xf32>, vector<8x16xf32>, vector<8x16xf32> -> vector<8x16xf32>
    %228 = vector.extract_strided_slice %207 {offsets = [0, 16], sizes = [8, 16], strides = [1, 1]} : vector<16x32xf32> to vector<8x16xf32>
    %229 = vector.extract_strided_slice %208 {offsets = [0, 16], sizes = [8, 16], strides = [1, 1]} : vector<16x32xf32> to vector<8x16xf32>
    %230 = vector.extract_strided_slice %209 {offsets = [0, 16], sizes = [8, 16], strides = [1, 1]} : vector<16x32xf32> to vector<8x16xf32>
    %cst_64 = arith.constant dense<0.000000e+00> : vector<8x8xf32>
    %231 = tpu.matmul %228, %229, %cst_64 {dimension_numbers = #tpu.dot_dimension_numbers<[1], [1], [0], [0], [0, 0, 1, 0], [], []>} : vector<8x16xf32>, vector<8x16xf32>, vector<8x8xf32> -> vector<8x8xf32>
    %232 = vector.broadcast %210 : vector<1x8xf32> to vector<8x8xf32>
    %233 = arith.addf %231, %232 : vector<8x8xf32>
    %cst_65 = arith.constant dense<0xFF800000> : vector<8xf32>
    %234 = vector.multi_reduction <maximumf>, %233, %cst_65 [1] : vector<8x8xf32> to vector<8xf32>
    %235 = vector.shape_cast %234 : vector<8xf32> to vector<8x1xf32>
    %236 = vector.broadcast %235 : vector<8x1xf32> to vector<8x8xf32>
    %237 = arith.subf %233, %236 : vector<8x8xf32>
    %238 = math.exp %237 : vector<8x8xf32>
    %cst_66 = arith.constant dense<0.000000e+00> : vector<8xf32>
    %239 = vector.multi_reduction <add>, %238, %cst_66 [1] : vector<8x8xf32> to vector<8xf32>
    %240 = vector.shape_cast %239 : vector<8xf32> to vector<8x1xf32>
    %241 = tpu.reciprocal %240 {approx = true} : vector<8x1xf32> -> vector<8x1xf32>
    %242 = vector.broadcast %241 : vector<8x1xf32> to vector<8x8xf32>
    %243 = arith.mulf %238, %242 : vector<8x8xf32>
    %cst_67 = arith.constant dense<0.000000e+00> : vector<8x16xf32>
    %244 = tpu.matmul %243, %230, %cst_67 {dimension_numbers = #tpu.dot_dimension_numbers<[1], [0], [0], [1], [0, 0, 1, 1], [], []>} : vector<8x8xf32>, vector<8x16xf32>, vector<8x16xf32> -> vector<8x16xf32>
    %245 = tpu.concatenate %227, %244 in 1 : vector<8x16xf32>, vector<8x16xf32> -> vector<8x32xf32>
    %246 = vector.extract_strided_slice %26 {offsets = [1, 0], sizes = [1, 8], strides = [1, 1]} : vector<2x8xf32> to vector<1x8xf32>
    %247 = vector.extract_strided_slice %207 {offsets = [8, 0], sizes = [8, 16], strides = [1, 1]} : vector<16x32xf32> to vector<8x16xf32>
    %248 = vector.extract_strided_slice %208 {offsets = [8, 0], sizes = [8, 16], strides = [1, 1]} : vector<16x32xf32> to vector<8x16xf32>
    %249 = vector.extract_strided_slice %209 {offsets = [8, 0], sizes = [8, 16], strides = [1, 1]} : vector<16x32xf32> to vector<8x16xf32>
    %cst_68 = arith.constant dense<0.000000e+00> : vector<8x8xf32>
    %250 = tpu.matmul %247, %248, %cst_68 {dimension_numbers = #tpu.dot_dimension_numbers<[1], [1], [0], [0], [0, 0, 1, 0], [], []>} : vector<8x16xf32>, vector<8x16xf32>, vector<8x8xf32> -> vector<8x8xf32>
    %251 = vector.broadcast %246 : vector<1x8xf32> to vector<8x8xf32>
    %252 = arith.addf %250, %251 : vector<8x8xf32>
    %cst_69 = arith.constant dense<0xFF800000> : vector<8xf32>
    %253 = vector.multi_reduction <maximumf>, %252, %cst_69 [1] : vector<8x8xf32> to vector<8xf32>
    %254 = vector.shape_cast %253 : vector<8xf32> to vector<8x1xf32>
    %255 = vector.broadcast %254 : vector<8x1xf32> to vector<8x8xf32>
    %256 = arith.subf %252, %255 : vector<8x8xf32>
    %257 = math.exp %256 : vector<8x8xf32>
    %cst_70 = arith.constant dense<0.000000e+00> : vector<8xf32>
    %258 = vector.multi_reduction <add>, %257, %cst_70 [1] : vector<8x8xf32> to vector<8xf32>
    %259 = vector.shape_cast %258 : vector<8xf32> to vector<8x1xf32>
    %260 = tpu.reciprocal %259 {approx = true} : vector<8x1xf32> -> vector<8x1xf32>
    %261 = vector.broadcast %260 : vector<8x1xf32> to vector<8x8xf32>
    %262 = arith.mulf %257, %261 : vector<8x8xf32>
    %cst_71 = arith.constant dense<0.000000e+00> : vector<8x16xf32>
    %263 = tpu.matmul %262, %249, %cst_71 {dimension_numbers = #tpu.dot_dimension_numbers<[1], [0], [0], [1], [0, 0, 1, 1], [], []>} : vector<8x8xf32>, vector<8x16xf32>, vector<8x16xf32> -> vector<8x16xf32>
    %264 = vector.extract_strided_slice %207 {offsets = [8, 16], sizes = [8, 16], strides = [1, 1]} : vector<16x32xf32> to vector<8x16xf32>
    %265 = vector.extract_strided_slice %208 {offsets = [8, 16], sizes = [8, 16], strides = [1, 1]} : vector<16x32xf32> to vector<8x16xf32>
    %266 = vector.extract_strided_slice %209 {offsets = [8, 16], sizes = [8, 16], strides = [1, 1]} : vector<16x32xf32> to vector<8x16xf32>
    %cst_72 = arith.constant dense<0.000000e+00> : vector<8x8xf32>
    %267 = tpu.matmul %264, %265, %cst_72 {dimension_numbers = #tpu.dot_dimension_numbers<[1], [1], [0], [0], [0, 0, 1, 0], [], []>} : vector<8x16xf32>, vector<8x16xf32>, vector<8x8xf32> -> vector<8x8xf32>
    %268 = vector.broadcast %246 : vector<1x8xf32> to vector<8x8xf32>
    %269 = arith.addf %267, %268 : vector<8x8xf32>
    %cst_73 = arith.constant dense<0xFF800000> : vector<8xf32>
    %270 = vector.multi_reduction <maximumf>, %269, %cst_73 [1] : vector<8x8xf32> to vector<8xf32>
    %271 = vector.shape_cast %270 : vector<8xf32> to vector<8x1xf32>
    %272 = vector.broadcast %271 : vector<8x1xf32> to vector<8x8xf32>
    %273 = arith.subf %269, %272 : vector<8x8xf32>
    %274 = math.exp %273 : vector<8x8xf32>
    %cst_74 = arith.constant dense<0.000000e+00> : vector<8xf32>
    %275 = vector.multi_reduction <add>, %274, %cst_74 [1] : vector<8x8xf32> to vector<8xf32>
    %276 = vector.shape_cast %275 : vector<8xf32> to vector<8x1xf32>
    %277 = tpu.reciprocal %276 {approx = true} : vector<8x1xf32> -> vector<8x1xf32>
    %278 = vector.broadcast %277 : vector<8x1xf32> to vector<8x8xf32>
    %279 = arith.mulf %274, %278 : vector<8x8xf32>
    %cst_75 = arith.constant dense<0.000000e+00> : vector<8x16xf32>
    %280 = tpu.matmul %279, %266, %cst_75 {dimension_numbers = #tpu.dot_dimension_numbers<[1], [0], [0], [1], [0, 0, 1, 1], [], []>} : vector<8x8xf32>, vector<8x16xf32>, vector<8x16xf32> -> vector<8x16xf32>
    %281 = tpu.concatenate %263, %280 in 1 : vector<8x16xf32>, vector<8x16xf32> -> vector<8x32xf32>
    %282 = tpu.concatenate %245, %281 in 0 : vector<8x32xf32>, vector<8x32xf32> -> vector<16x32xf32>
    %283 = arith.truncf %282 : vector<16x32xf32> to vector<16x32xbf16>
    %cst_76 = arith.constant dense<0.000000e+00> : vector<16x32xf32>
    %284 = tpu.matmul %283, %189, %cst_76 {dimension_numbers = #tpu.dot_dimension_numbers<[1], [0], [0], [1], [0, 0, 1, 1], [], []>} : vector<16x32xbf16>, vector<32x32xbf16>, vector<16x32xf32> -> vector<16x32xf32>
    %285 = vector.broadcast %196 : vector<1x32xf32> to vector<16x32xf32>
    %286 = arith.addf %284, %285 : vector<16x32xf32>
    %287 = arith.addf %286, %185 : vector<16x32xf32>
    %cst_77 = arith.constant dense<0.000000e+00> : vector<16xf32>
    %288 = vector.multi_reduction <add>, %287, %cst_77 [1] : vector<16x32xf32> to vector<16xf32>
    %289 = vector.shape_cast %288 : vector<16xf32> to vector<16x1xf32>
    %cst_78 = arith.constant 3.200000e+01 : f32
    %290 = vector.broadcast %cst_78 : f32 to vector<16x1xf32>
    %291 = arith.divf %289, %290 : vector<16x1xf32>
    %292 = vector.broadcast %291 : vector<16x1xf32> to vector<16x32xf32>
    %293 = arith.subf %287, %292 : vector<16x32xf32>
    %294 = arith.mulf %293, %293 : vector<16x32xf32>
    %cst_79 = arith.constant dense<0.000000e+00> : vector<16xf32>
    %295 = vector.multi_reduction <add>, %294, %cst_79 [1] : vector<16x32xf32> to vector<16xf32>
    %296 = vector.shape_cast %295 : vector<16xf32> to vector<16x1xf32>
    %cst_80 = arith.constant 3.200000e+01 : f32
    %297 = vector.broadcast %cst_80 : f32 to vector<16x1xf32>
    %298 = arith.divf %296, %297 : vector<16x1xf32>
    %cst_81 = arith.constant 9.99999974E-6 : f32
    %299 = vector.broadcast %cst_81 : f32 to vector<16x1xf32>
    %300 = arith.addf %298, %299 : vector<16x1xf32>
    %301 = math.rsqrt %300 : vector<16x1xf32>
    %302 = vector.broadcast %301 : vector<16x1xf32> to vector<16x32xf32>
    %303 = arith.mulf %293, %302 : vector<16x32xf32>
    %304 = vector.broadcast %197 : vector<1x32xf32> to vector<16x32xf32>
    %305 = arith.mulf %303, %304 : vector<16x32xf32>
    %306 = vector.broadcast %198 : vector<1x32xf32> to vector<16x32xf32>
    %307 = arith.addf %305, %306 : vector<16x32xf32>
    %308 = arith.truncf %307 : vector<16x32xf32> to vector<16x32xbf16>
    %cst_82 = arith.constant dense<0.000000e+00> : vector<16x64xf32>
    %309 = tpu.matmul %308, %190, %cst_82 {dimension_numbers = #tpu.dot_dimension_numbers<[1], [0], [0], [1], [0, 0, 1, 1], [], []>} : vector<16x32xbf16>, vector<32x64xbf16>, vector<16x64xf32> -> vector<16x64xf32>
    %310 = vector.broadcast %199 : vector<1x64xf32> to vector<16x64xf32>
    %311 = arith.addf %309, %310 : vector<16x64xf32>
    %cst_83 = arith.constant 5.000000e-01 : f32
    %312 = vector.broadcast %cst_83 : f32 to vector<16x64xf32>
    %313 = arith.mulf %312, %311 : vector<16x64xf32>
    %cst_84 = arith.constant 0.707106769 : f32
    %314 = vector.broadcast %cst_84 : f32 to vector<16x64xf32>
    %315 = arith.mulf %311, %314 : vector<16x64xf32>
    %316 = math.erf %315 : vector<16x64xf32>
    %cst_85 = arith.constant 1.000000e+00 : f32
    %317 = vector.broadcast %cst_85 : f32 to vector<16x64xf32>
    %318 = arith.addf %317, %316 : vector<16x64xf32>
    %319 = arith.mulf %313, %318 : vector<16x64xf32>
    %320 = arith.truncf %319 : vector<16x64xf32> to vector<16x64xbf16>
    %cst_86 = arith.constant dense<0.000000e+00> : vector<16x32xf32>
    %321 = tpu.matmul %320, %192, %cst_86 {dimension_numbers = #tpu.dot_dimension_numbers<[1], [0], [0], [1], [0, 0, 1, 1], [], []>} : vector<16x64xbf16>, vector<64x32xbf16>, vector<16x32xf32> -> vector<16x32xf32>
    %322 = vector.broadcast %200 : vector<1x32xf32> to vector<16x32xf32>
    %323 = arith.addf %321, %322 : vector<16x32xf32>
    %324 = arith.addf %323, %307 : vector<16x32xf32>
    %cst_87 = arith.constant dense<0.000000e+00> : vector<16xf32>
    %325 = vector.multi_reduction <add>, %324, %cst_87 [1] : vector<16x32xf32> to vector<16xf32>
    %326 = vector.shape_cast %325 : vector<16xf32> to vector<16x1xf32>
    %cst_88 = arith.constant 3.200000e+01 : f32
    %327 = vector.broadcast %cst_88 : f32 to vector<16x1xf32>
    %328 = arith.divf %326, %327 : vector<16x1xf32>
    %329 = vector.broadcast %328 : vector<16x1xf32> to vector<16x32xf32>
    %330 = arith.subf %324, %329 : vector<16x32xf32>
    %331 = arith.mulf %330, %330 : vector<16x32xf32>
    %cst_89 = arith.constant dense<0.000000e+00> : vector<16xf32>
    %332 = vector.multi_reduction <add>, %331, %cst_89 [1] : vector<16x32xf32> to vector<16xf32>
    %333 = vector.shape_cast %332 : vector<16xf32> to vector<16x1xf32>
    %cst_90 = arith.constant 3.200000e+01 : f32
    %334 = vector.broadcast %cst_90 : f32 to vector<16x1xf32>
    %335 = arith.divf %333, %334 : vector<16x1xf32>
    %cst_91 = arith.constant 9.99999974E-6 : f32
    %336 = vector.broadcast %cst_91 : f32 to vector<16x1xf32>
    %337 = arith.addf %335, %336 : vector<16x1xf32>
    %338 = math.rsqrt %337 : vector<16x1xf32>
    %339 = vector.broadcast %338 : vector<16x1xf32> to vector<16x32xf32>
    %340 = arith.mulf %330, %339 : vector<16x32xf32>
    %341 = vector.broadcast %201 : vector<1x32xf32> to vector<16x32xf32>
    %342 = arith.mulf %340, %341 : vector<16x32xf32>
    %343 = vector.broadcast %202 : vector<1x32xf32> to vector<16x32xf32>
    %344 = arith.addf %342, %343 : vector<16x32xf32>
    %345 = vector.extract_strided_slice %344 {offsets = [0, 0], sizes = [1, 32], strides = [1, 1]} : vector<16x32xf32> to vector<1x32xf32>
    %346 = vector.extract_strided_slice %344 {offsets = [8, 0], sizes = [1, 32], strides = [1, 1]} : vector<16x32xf32> to vector<1x32xf32>
    %347 = tpu.concatenate %345, %346 in 0 : vector<1x32xf32>, vector<1x32xf32> -> vector<2x32xf32>
    %c0_92 = arith.constant 0 : index
    %c0_93 = arith.constant 0 : index
    %348 = vector.load %arg6[%c0_92, %c0_93] : memref<32x160xbf16, #tpu.memory_space<vmem>>, vector<32x160xbf16>
    %349 = vector.extract_strided_slice %348 {offsets = [0, 0], sizes = [32, 32], strides = [1, 1]} : vector<32x160xbf16> to vector<32x32xbf16>
    %350 = vector.extract_strided_slice %348 {offsets = [0, 32], sizes = [32, 128], strides = [1, 1]} : vector<32x160xbf16> to vector<32x128xbf16>
    %351 = arith.truncf %347 : vector<2x32xf32> to vector<2x32xbf16>
    %cst_94 = arith.constant dense<0.000000e+00> : vector<2x32xf32>
    %352 = tpu.matmul %351, %349, %cst_94 {dimension_numbers = #tpu.dot_dimension_numbers<[1], [0], [0], [1], [0, 0, 1, 1], [], []>} : vector<2x32xbf16>, vector<32x32xbf16>, vector<2x32xf32> -> vector<2x32xf32>
    %353 = vector.broadcast %3 : vector<1x32xf32> to vector<2x32xf32>
    %354 = arith.addf %352, %353 : vector<2x32xf32>
    %355 = math.tanh %354 : vector<2x32xf32>
    %356 = arith.truncf %355 : vector<2x32xf32> to vector<2x32xbf16>
    %cst_95 = arith.constant dense<0.000000e+00> : vector<2x128xf32>
    %357 = tpu.matmul %356, %350, %cst_95 {dimension_numbers = #tpu.dot_dimension_numbers<[1], [0], [0], [1], [0, 0, 1, 1], [], []>} : vector<2x32xbf16>, vector<32x128xbf16>, vector<2x128xf32> -> vector<2x128xf32>
    %358 = vector.broadcast %4 : vector<1x128xf32> to vector<2x128xf32>
    %359 = arith.addf %357, %358 : vector<2x128xf32>
    %c0_96 = arith.constant 0 : index
    %c0_97 = arith.constant 0 : index
    %360 = vector.load %arg7[%c0_96, %c0_97] : memref<2x128xf32, #tpu.memory_space<vmem>>, vector<2x128xf32>
    tpu.vector_store %arg7[%c0_96, %c0_97], %359 {strides = array<i32>} : memref<2x128xf32, #tpu.memory_space<vmem>>, vector<2x128xf32>,
    return
  }
}

</mosaic_0001>

<llo_original>
// kernel: roberta_classifier_forward.1
$region0: #{roberta_classifier_forward.1}
  #allocation0 [shape = 'u32[]', space=smem, size = 0x4, offset = 0x4, fixed_abs, tag = 'smem constant byte address 0x4 - core index']
  #allocation1 [shape = 'u32[144,128]{1,0:T(1,128)}', space=vmem, size = 0x12000, scoped, tag = 'internal scratch']
  %s0 = inlined_call_operand.vmem [shape: f32[16,32], index: 0, kind: input, shape index: {}]
  %s1 = inlined_call_operand.vmem [shape: f32[2,8], index: 1, kind: input, shape index: {}]
  %s2 = inlined_call_operand.vmem [shape: f32[4,128], index: 2, kind: input, shape index: {}]
  %s3 = inlined_call_operand.vmem [shape: f32[2,8,128], index: 3, kind: input, shape index: {}]
  %s4 = inlined_call_operand.vmem [shape: bf16[2,32,192], index: 4, kind: input, shape index: {}]
  %s5 = inlined_call_operand.vmem [shape: bf16[2,64,32], index: 5, kind: input, shape index: {}]
  %s6 = inlined_call_operand.vmem [shape: bf16[32,160], index: 6, kind: input, shape index: {}]
  %s7 = inlined_call_operand.hbm [shape: f32[2,128], index: 7, kind: output, shape index: {}]
  %s8 = sld [smem:[#allocation0]]
  $region38: #{roberta_classifier_forward.1} parent=0
    _
  %s10 = ssub.s32 1, %s8
  %s11 = scalar_select 0, %s10, %s8
  $region1: #{roberta_classifier_forward.1} parent=0
    #allocation2 [shape = 'u8[1024]{0}', space=vmem, size = 0x400, scoped, tag = 'output window, operand 0, single buffered']
    #allocation3 [shape = 's32[1]{0}', space=sflag, size = 0x4, scoped, tag = 'scoped memory for roberta_classifier_forward.1']
    %12 = vsyncpa [#allocation3], 0
    // Predicated region
    $region2: #{roberta_classifier_forward.1} parent=1 // pred_check
      _
    $region3: #{roberta_classifier_forward.1} parent=1 // pred_check_branch
      %14 = sbr.rel (0) target = $region5
    $region4: #{roberta_classifier_forward.1} parent=1 // pred_region
      _
    $region5: #{roberta_classifier_forward.1} parent=1 // pred_fallthru
      _
    // Predicated region
    $region6: #{roberta_classifier_forward.1} parent=1 // pred_check
      _
    $region7: #{roberta_classifier_forward.1} parent=1 // pred_check_branch
      %16 = sbr.rel (0) target = $region9
    $region8: #{roberta_classifier_forward.1} parent=1 // pred_region
      _
    $region9: #{roberta_classifier_forward.1} parent=1 // pred_fallthru
      _
    // Predicated region
    $region10: #{roberta_classifier_forward.1} parent=1 // pred_check
      _
    $region11: #{roberta_classifier_forward.1} parent=1 // pred_check_branch
      %18 = sbr.rel (0) target = $region13
    $region12: #{roberta_classifier_forward.1} parent=1 // pred_region
      _
    $region13: #{roberta_classifier_forward.1} parent=1 // pred_fallthru
      _
    // Predicated region
    $region14: #{roberta_classifier_forward.1} parent=1 // pred_check
      _
    $region15: #{roberta_classifier_forward.1} parent=1 // pred_check_branch
      %20 = sbr.rel (0) target = $region17
    $region16: #{roberta_classifier_forward.1} parent=1 // pred_region
      _
    $region17: #{roberta_classifier_forward.1} parent=1 // pred_fallthru
      _
    // Predicated region
    $region18: #{roberta_classifier_forward.1} parent=1 // pred_check
      _
    $region19: #{roberta_classifier_forward.1} parent=1 // pred_check_branch
      %22 = sbr.rel (0) target = $region21
    $region20: #{roberta_classifier_forward.1} parent=1 // pred_region
      _
    $region21: #{roberta_classifier_forward.1} parent=1 // pred_fallthru
      _
    // Predicated region
    $region22: #{roberta_classifier_forward.1} parent=1 // pred_check
      _
    $region23: #{roberta_classifier_forward.1} parent=1 // pred_check_branch
      %24 = sbr.rel (0) target = $region25
    $region24: #{roberta_classifier_forward.1} parent=1 // pred_region
      _
    $region25: #{roberta_classifier_forward.1} parent=1 // pred_fallthru
      _
    // Predicated region
    $region26: #{roberta_classifier_forward.1} parent=1 // pred_check
      _
    $region27: #{roberta_classifier_forward.1} parent=1 // pred_check_branch
      %26 = sbr.rel (0) target = $region29
    $region28: #{roberta_classifier_forward.1} parent=1 // pred_region
      _
    $region29: #{roberta_classifier_forward.1} parent=1 // pred_fallthru
      _
    %v28 = vld [vmem:[%s2] sm:$0xf]
    %v29 = vld [vmem:[%s0] sm:$0xff]
    %v30 = vld [vmem:[%s0 + $0x8] sm:$0xff]
    %vm31 = vcmask 261120
    %v32 = vsel %vm31, %v29, 0.0
    %33 = vadd.xlane.f32.xlu0 %v32
    %v34 = vpop.xlane.xlu0 %33
    %v35 = vsel %vm31, %v30, 0.0
    %36 = vadd.xlane.f32.xlu0 %v35
    %v37 = vpop.xlane.xlu0 %36
    %v38 = vrcp.pop 32.0
    %v39 = vmul.f32 %v34, %v38
    %v40 = vmul.f32 %v37, %v38
    %v41 = vsub.f32 %v29, %v39
    %v42 = vsub.f32 %v30, %v40
    %v43 = vmul.f32 %v41, %v41
    %v44 = vmul.f32 %v42, %v42
    %v45 = vsel %vm31, %v43, 0.0
    %46 = vadd.xlane.f32.xlu0 %v45
    %v47 = vpop.xlane.xlu0 %46
    %v48 = vsel %vm31, %v44, 0.0
    %49 = vadd.xlane.f32.xlu0 %v48
    %v50 = vpop.xlane.xlu0 %49
    %v51 = vmul.f32 %v47, %v38
    %v52 = vmul.f32 %v50, %v38
    %v53 = vadd.f32 %v51, 1e-05
    %v54 = vadd.f32 %v52, 1e-05
    %v55 = vrsqrt.pop %v53
    %v56 = vrsqrt.pop %v54
    %v57 = vmul.f32 %v41, %v55
    %v58 = vmul.f32 %v42, %v56
    %v59 = vlaneseq
    %v60 = vshrl.u32 %v59, 7
    %v61 = vsub.s32 0, %v60
    %v62 = vrot.slane %v28, %v61
    %v63 = vmul.f32 %v57, %v62
    %v64 = vmul.f32 %v58, %v62
    %v65 = vlaneseq
    %v66 = vshrl.u32 %v65, 7
    %v67 = vsub.s32 1, %v66
    %v68 = vrot.slane %v28, %v67
    %v69 = vadd.f32 %v63, %v68
    %v70 = vadd.f32 %v64, %v68
    %v71 = vld [vmem:[%s1] sm:$0x3]
    %v72 = vld [vmem:[%s4] sm:$0xff]
    %v73 = vld [vmem:[%s4 + $0x8] sm:$0xff]
    %v74 = vld [vmem:[%s4 + $0x10] sm:$0xff]
    %v75 = vld [vmem:[%s4 + $0x18] sm:$0xff]
    %v76 = vld [vmem:[%s5] sm:$0xf]
    %v77 = vld [vmem:[%s5 + $0x4] sm:$0xf]
    %v78 = vld [vmem:[%s5 + $0x8] sm:$0xf]
    %v79 = vld [vmem:[%s5 + $0xc] sm:$0xf]
    %v80 = vld [vmem:[%s5 + $0x10] sm:$0xf]
    %v81 = vld [vmem:[%s5 + $0x14] sm:$0xf]
    %v82 = vld [vmem:[%s5 + $0x18] sm:$0xf]
    %v83 = vld [vmem:[%s5 + $0x1c] sm:$0xf]
    %v84 = vld [vmem:[%s3] sm:$0xff]
    %v85 = vpack.c.bf16 %v70, %v69
    %v86 = vlaneseq
    %v87 = vshrl.u32 %v86, 7
    %v88 = vsub.s32 0, %v87
    %v89 = vrot.slane %v84, %v88
    %v94 = vunpack.c.l.b16 %v72
    %v95 = vunpack.c.l.b16 %v73
    %v96 = vunpack.c.l.b16 %v74
    %v97 = vunpack.c.l.b16 %v75
    %v98 = vpack.c.b16 %v95, %v94
    %v99 = vpack.c.b16 %v97, %v96
    %v103 = vsel %vm31, %v85, 0
    %105 = vmatprep.subr.bf16.mxu0 0
    %106 = vmatpush1.bf16.msra.mxu0 %v98
    %107 = vmatprep.subr.bf16.mxu0 0
    %108 = vmatpush1.bf16.msra.mxu0 %v99
    %109 = vmatprep.subr.bf16.mxu0 0
    %110 = vmatpush1.bf16.msra.mxu0 0
    %111 = vmatprep.subr.bf16.mxu0 0
    %112 = vmatpush1.bf16.msra.mxu0 0
    %113 = vmatprep.subr.bf16.mxu0 0
    %114 = vmatpush1.bf16.msra.mxu0 0
    %115 = vmatprep.subr.bf16.mxu0 0
    %116 = vmatpush1.bf16.msra.mxu0 0
    %117 = vmatprep.subr.bf16.mxu0 0
    %118 = vmatpush1.bf16.msra.mxu0 0
    %119 = vmatprep.subr.bf16.mxu0 0
    %120 = vmatpush1.bf16.msra.mxu0 0
    %121 = vmatprep.subr.bf16.mxu0 0
    %122 = vmatpush1.bf16.msra.mxu0 0
    %123 = vmatprep.subr.bf16.mxu0 0
    %124 = vmatpush1.bf16.msra.mxu0 0
    %125 = vmatprep.subr.bf16.mxu0 0
    %126 = vmatpush1.bf16.msra.mxu0 0
    %127 = vmatprep.subr.bf16.mxu0 0
    %128 = vmatpush1.bf16.msra.mxu0 0
    %129 = vmatprep.subr.bf16.mxu0 0
    %130 = vmatpush1.bf16.msra.mxu0 0
    %131 = vmatprep.subr.bf16.mxu0 0
    %132 = vmatpush1.bf16.msra.mxu0 0
    %133 = vmatprep.subr.bf16.mxu0 0
    %134 = vmatpush1.bf16.msra.mxu0 0
    %135 = vmatprep.subr.bf16.mxu0 0
    %136 = vmatpush1.bf16.msra.mxu0 0
    %137 = vmatprep.mubr.bf16.mxu0 0
    %138 = vmatmul.mubr.bf16.gmra.mrb[0].mxu0 %v103
    %v139 = vpop.f32.mrb[0].mxu0
    %v140 = vadd.f32 %v89, %v139
    %v141 = vpop.f32.mrb[0].mxu0
    %v142 = vpop.f32.mrb[0].mxu0
    %v143 = vadd.f32 %v89, %v142
    %v144 = vpop.f32.mrb[0].mxu0
    %145 = vdwg.mxu0
    %v146 = vlaneseq
    %v147 = vshrl.u32 %v146, 7
    %v148 = vsub.s32 0, %v147
    %v149 = vrot.slane %v71, %v148
    %151 = vrot.lane.b32.xlu0 %v140, 96
    %v152 = vpop.permute.xlu0 %151
    %vm153 = vcmask 130048
    %v154 = vsel %vm153, %v140, 0
    %v156 = vsel %vm153, %v152, 0
    %158 = vmatprep.subr.mxu0 0.0
    %159 = vmatpush1.xpose.msra.mxu0 %v156
    %160 = vmatprep.subr.mxu0 0.0
    %161 = vmatpush1.xpose.msra.mxu0 0.0
    %162 = vmatprep.subr.mxu0 0.0
    %163 = vmatpush1.xpose.msra.mxu0 0.0
    %164 = vmatprep.subr.mxu0 0.0
    %165 = vmatpush1.xpose.msra.mxu0 0.0
    %166 = vmatprep.subr.mxu0 0.0
    %167 = vmatpush1.xpose.msra.mxu0 0.0
    %168 = vmatprep.subr.mxu0 0.0
    %169 = vmatpush1.xpose.msra.mxu0 0.0
    %170 = vmatprep.subr.mxu0 0.0
    %171 = vmatpush1.xpose.msra.mxu0 0.0
    %172 = vmatprep.subr.mxu0 0.0
    %173 = vmatpush1.xpose.msra.mxu0 0.0
    %174 = vmatprep.subr.mxu0 0.0
    %175 = vmatpush1.xpose.msra.mxu0 0.0
    %176 = vmatprep.subr.mxu0 0.0
    %177 = vmatpush1.xpose.msra.mxu0 0.0
    %178 = vmatprep.subr.mxu0 0.0
    %179 = vmatpush1.xpose.msra.mxu0 0.0
    %180 = vmatprep.subr.mxu0 0.0
    %181 = vmatpush1.xpose.msra.mxu0 0.0
    %182 = vmatprep.subr.mxu0 0.0
    %183 = vmatpush1.xpose.msra.mxu0 0.0
    %184 = vmatprep.subr.mxu0 0.0
    %185 = vmatpush1.xpose.msra.mxu0 0.0
    %186 = vmatprep.subr.mxu0 0.0
    %187 = vmatpush1.xpose.msra.mxu0 0.0
    %188 = vmatprep.subr.mxu0 0.0
    %189 = vmatpush1.xpose.msra.mxu0 0.0
    %190 = vmatprep.subr.mxu0 0.0
    %191 = vmatpush1.xpose.msra.mxu0 0.0
    %192 = vmatprep.subr.mxu0 0.0
    %193 = vmatpush1.xpose.msra.mxu0 0.0
    %194 = vmatprep.subr.mxu0 0.0
    %195 = vmatpush1.xpose.msra.mxu0 0.0
    %196 = vmatprep.subr.mxu0 0.0
    %197 = vmatpush1.xpose.msra.mxu0 0.0
    %198 = vmatprep.subr.mxu0 0.0
    %199 = vmatpush1.xpose.msra.mxu0 0.0
    %200 = vmatprep.subr.mxu0 0.0
    %201 = vmatpush1.xpose.msra.mxu0 0.0
    %202 = vmatprep.subr.mxu0 0.0
    %203 = vmatpush1.xpose.msra.mxu0 0.0
    %204 = vmatprep.subr.mxu0 0.0
    %205 = vmatpush1.xpose.msra.mxu0 0.0
    %206 = vmatprep.subr.mxu0 0.0
    %207 = vmatpush1.xpose.msra.mxu0 0.0
    %208 = vmatprep.subr.mxu0 0.0
    %209 = vmatpush1.xpose.msra.mxu0 0.0
    %210 = vmatprep.subr.mxu0 0.0
    %211 = vmatpush1.xpose.msra.mxu0 0.0
    %212 = vmatprep.subr.mxu0 0.0
    %213 = vmatpush1.xpose.msra.mxu0 0.0
    %214 = vmatprep.subr.mxu0 0.0
    %215 = vmatpush1.xpose.msra.mxu0 0.0
    %216 = vmatprep.subr.mxu0 0.0
    %217 = vmatpush1.xpose.msra.mxu0 0.0
    %218 = vmatprep.subr.mxu0 0.0
    %219 = vmatpush1.xpose.msra.mxu0 0.0
    %220 = vmatprep.subr.mxu0 0.0
    %221 = vmatpush1.xpose.msra.mxu0 0.0
    %222 = vmatprep.mubr.f32.mxu0 0.0
    %223 = vmatmul.mubr.f32.gmra.mrb[0].mxu0 %v154
    %v224 = vpop.f32.mrb[0].mxu0
    %v225 = vadd.f32 %v149, %v224
    %v226 = vpop.f32.mrb[0].mxu0
    %227 = vdwg.mxu0
    %vm228 = vcmask 64512
    %v229 = vsel %vm228, %v225, -inf
    %230 = vmax.xlane.f32.xlu0 %v229
    %v231 = vpop.xlane.xlu0 %230
    %v232 = vsub.f32 %v225, %v231
    %v233 = vmul.f32 %v232, 1.442695
    %v234 = vpow.pop %v233
    %v235 = vsel %vm228, %v234, 0.0
    %236 = vadd.xlane.f32.xlu0 %v235
    %v237 = vpop.xlane.xlu0 %236
    %v238 = vrcp.pop %v237
    %v239 = vmul.f32 %v234, %v238
    %240 = vrot.lane.b32.xlu0 %v140, 64
    %v241 = vpop.permute.xlu0 %240
    %v244 = vsel %vm228, %v239, 0
    %246 = vmatprep.subr.mxu0 0.0
    %247 = vmatpush1.msra.mxu0 %v241
    %248 = vmatprep.subr.mxu0 0.0
    %249 = vmatpush1.msra.mxu0 0.0
    %250 = vmatprep.subr.mxu0 0.0
    %251 = vmatpush1.msra.mxu0 0.0
    %252 = vmatprep.subr.mxu0 0.0
    %253 = vmatpush1.msra.mxu0 0.0
    %254 = vmatprep.subr.mxu0 0.0
    %255 = vmatpush1.msra.mxu0 0.0
    %256 = vmatprep.subr.mxu0 0.0
    %257 = vmatpush1.msra.mxu0 0.0
    %258 = vmatprep.subr.mxu0 0.0
    %259 = vmatpush1.msra.mxu0 0.0
    %260 = vmatprep.subr.mxu0 0.0
    %261 = vmatpush1.msra.mxu0 0.0
    %262 = vmatprep.subr.mxu0 0.0
    %263 = vmatpush1.msra.mxu0 0.0
    %264 = vmatprep.subr.mxu0 0.0
    %265 = vmatpush1.msra.mxu0 0.0
    %266 = vmatprep.subr.mxu0 0.0
    %267 = vmatpush1.msra.mxu0 0.0
    %268 = vmatprep.subr.mxu0 0.0
    %269 = vmatpush1.msra.mxu0 0.0
    %270 = vmatprep.subr.mxu0 0.0
    %271 = vmatpush1.msra.mxu0 0.0
    %272 = vmatprep.subr.mxu0 0.0
    %273 = vmatpush1.msra.mxu0 0.0
    %274 = vmatprep.subr.mxu0 0.0
    %275 = vmatpush1.msra.mxu0 0.0
    %276 = vmatprep.subr.mxu0 0.0
    %277 = vmatpush1.msra.mxu0 0.0
    %278 = vmatprep.subr.mxu0 0.0
    %279 = vmatpush1.msra.mxu0 0.0
    %280 = vmatprep.subr.mxu0 0.0
    %281 = vmatpush1.msra.mxu0 0.0
    %282 = vmatprep.subr.mxu0 0.0
    %283 = vmatpush1.msra.mxu0 0.0
    %284 = vmatprep.subr.mxu0 0.0
    %285 = vmatpush1.msra.mxu0 0.0
    %286 = vmatprep.subr.mxu0 0.0
    %287 = vmatpush1.msra.mxu0 0.0
    %288 = vmatprep.subr.mxu0 0.0
    %289 = vmatpush1.msra.mxu0 0.0
    %290 = vmatprep.subr.mxu0 0.0
    %291 = vmatpush1.msra.mxu0 0.0
    %292 = vmatprep.subr.mxu0 0.0
    %293 = vmatpush1.msra.mxu0 0.0
    %294 = vmatprep.subr.mxu0 0.0
    %295 = vmatpush1.msra.mxu0 0.0
    %296 = vmatprep.subr.mxu0 0.0
    %297 = vmatpush1.msra.mxu0 0.0
    %298 = vmatprep.subr.mxu0 0.0
    %299 = vmatpush1.msra.mxu0 0.0
    %300 = vmatprep.subr.mxu0 0.0
    %301 = vmatpush1.msra.mxu0 0.0
    %302 = vmatprep.subr.mxu0 0.0
    %303 = vmatpush1.msra.mxu0 0.0
    %304 = vmatprep.subr.mxu0 0.0
    %305 = vmatpush1.msra.mxu0 0.0
    %306 = vmatprep.subr.mxu0 0.0
    %307 = vmatpush1.msra.mxu0 0.0
    %308 = vmatprep.subr.mxu0 0.0
    %309 = vmatpush1.msra.mxu0 0.0
    %310 = vmatprep.mubr.f32.mxu0 0.0
    %311 = vmatmul.mubr.f32.gmra.mrb[0].mxu0 %v244
    %v312 = vpop.f32.mrb[0].mxu0
    %v313 = vadd.f32 0.0, %v312
    %v314 = vpop.f32.mrb[0].mxu0
    %315 = vdwg.mxu0
    %316 = vrot.lane.b32.xlu0 %v140, 112
    %v317 = vpop.permute.xlu0 %316
    %318 = vrot.lane.b32.xlu0 %v140, 80
    %v319 = vpop.permute.xlu0 %318
    %v320 = vsel %vm153, %v317, 0
    %v322 = vsel %vm153, %v319, 0
    %324 = vmatprep.subr.mxu0 0.0
    %325 = vmatpush1.xpose.msra.mxu0 %v322
    %326 = vmatprep.subr.mxu0 0.0
    %327 = vmatpush1.xpose.msra.mxu0 0.0
    %328 = vmatprep.subr.mxu0 0.0
    %329 = vmatpush1.xpose.msra.mxu0 0.0
    %330 = vmatprep.subr.mxu0 0.0
    %331 = vmatpush1.xpose.msra.mxu0 0.0
    %332 = vmatprep.subr.mxu0 0.0
    %333 = vmatpush1.xpose.msra.mxu0 0.0
    %334 = vmatprep.subr.mxu0 0.0
    %335 = vmatpush1.xpose.msra.mxu0 0.0
    %336 = vmatprep.subr.mxu0 0.0
    %337 = vmatpush1.xpose.msra.mxu0 0.0
    %338 = vmatprep.subr.mxu0 0.0
    %339 = vmatpush1.xpose.msra.mxu0 0.0
    %340 = vmatprep.subr.mxu0 0.0
    %341 = vmatpush1.xpose.msra.mxu0 0.0
    %342 = vmatprep.subr.mxu0 0.0
    %343 = vmatpush1.xpose.msra.mxu0 0.0
    %344 = vmatprep.subr.mxu0 0.0
    %345 = vmatpush1.xpose.msra.mxu0 0.0
    %346 = vmatprep.subr.mxu0 0.0
    %347 = vmatpush1.xpose.msra.mxu0 0.0
    %348 = vmatprep.subr.mxu0 0.0
    %349 = vmatpush1.xpose.msra.mxu0 0.0
    %350 = vmatprep.subr.mxu0 0.0
    %351 = vmatpush1.xpose.msra.mxu0 0.0
    %352 = vmatprep.subr.mxu0 0.0
    %353 = vmatpush1.xpose.msra.mxu0 0.0
    %354 = vmatprep.subr.mxu0 0.0
    %355 = vmatpush1.xpose.msra.mxu0 0.0
    %356 = vmatprep.subr.mxu0 0.0
    %357 = vmatpush1.xpose.msra.mxu0 0.0
    %358 = vmatprep.subr.mxu0 0.0
    %359 = vmatpush1.xpose.msra.mxu0 0.0
    %360 = vmatprep.subr.mxu0 0.0
    %361 = vmatpush1.xpose.msra.mxu0 0.0
    %362 = vmatprep.subr.mxu0 0.0
    %363 = vmatpush1.xpose.msra.mxu0 0.0
    %364 = vmatprep.subr.mxu0 0.0
    %365 = vmatpush1.xpose.msra.mxu0 0.0
    %366 = vmatprep.subr.mxu0 0.0
    %367 = vmatpush1.xpose.msra.mxu0 0.0
    %368 = vmatprep.subr.mxu0 0.0
    %369 = vmatpush1.xpose.msra.mxu0 0.0
    %370 = vmatprep.subr.mxu0 0.0
    %371 = vmatpush1.xpose.msra.mxu0 0.0
    %372 = vmatprep.subr.mxu0 0.0
    %373 = vmatpush1.xpose.msra.mxu0 0.0
    %374 = vmatprep.subr.mxu0 0.0
    %375 = vmatpush1.xpose.msra.mxu0 0.0
    %376 = vmatprep.subr.mxu0 0.0
    %377 = vmatpush1.xpose.msra.mxu0 0.0
    %378 = vmatprep.subr.mxu0 0.0
    %379 = vmatpush1.xpose.msra.mxu0 0.0
    %380 = vmatprep.subr.mxu0 0.0
    %381 = vmatpush1.xpose.msra.mxu0 0.0
    %382 = vmatprep.subr.mxu0 0.0
    %383 = vmatpush1.xpose.msra.mxu0 0.0
    %384 = vmatprep.subr.mxu0 0.0
    %385 = vmatpush1.xpose.msra.mxu0 0.0
    %386 = vmatprep.subr.mxu0 0.0
    %387 = vmatpush1.xpose.msra.mxu0 0.0
    %388 = vmatprep.mubr.f32.mxu0 0.0
    %389 = vmatmul.mubr.f32.gmra.mrb[0].mxu0 %v320
    %v390 = vpop.f32.mrb[0].mxu0
    %v391 = vadd.f32 %v149, %v390
    %v392 = vpop.f32.mrb[0].mxu0
    %393 = vdwg.mxu0
    %v394 = vsel %vm228, %v391, -inf
    %395 = vmax.xlane.f32.xlu0 %v394
    %v396 = vpop.xlane.xlu0 %395
    %v397 = vsub.f32 %v391, %v396
    %v398 = vmul.f32 %v397, 1.442695
    %v399 = vpow.pop %v398
    %v400 = vsel %vm228, %v399, 0.0
    %401 = vadd.xlane.f32.xlu0 %v400
    %v402 = vpop.xlane.xlu0 %401
    %v403 = vrcp.pop %v402
    %v404 = vmul.f32 %v399, %v403
    %405 = vrot.lane.b32.xlu0 %v140, 48
    %v406 = vpop.permute.xlu0 %405
    %v409 = vsel %vm228, %v404, 0
    %411 = vmatprep.subr.mxu0 0.0
    %412 = vmatpush1.msra.mxu0 %v406
    %413 = vmatprep.subr.mxu0 0.0
    %414 = vmatpush1.msra.mxu0 0.0
    %415 = vmatprep.subr.mxu0 0.0
    %416 = vmatpush1.msra.mxu0 0.0
    %417 = vmatprep.subr.mxu0 0.0
    %418 = vmatpush1.msra.mxu0 0.0
    %419 = vmatprep.subr.mxu0 0.0
    %420 = vmatpush1.msra.mxu0 0.0
    %421 = vmatprep.subr.mxu0 0.0
    %422 = vmatpush1.msra.mxu0 0.0
    %423 = vmatprep.subr.mxu0 0.0
    %424 = vmatpush1.msra.mxu0 0.0
    %425 = vmatprep.subr.mxu0 0.0
    %426 = vmatpush1.msra.mxu0 0.0
    %427 = vmatprep.subr.mxu0 0.0
    %428 = vmatpush1.msra.mxu0 0.0
    %429 = vmatprep.subr.mxu0 0.0
    %430 = vmatpush1.msra.mxu0 0.0
    %431 = vmatprep.subr.mxu0 0.0
    %432 = vmatpush1.msra.mxu0 0.0
    %433 = vmatprep.subr.mxu0 0.0
    %434 = vmatpush1.msra.mxu0 0.0
    %435 = vmatprep.subr.mxu0 0.0
    %436 = vmatpush1.msra.mxu0 0.0
    %437 = vmatprep.subr.mxu0 0.0
    %438 = vmatpush1.msra.mxu0 0.0
    %439 = vmatprep.subr.mxu0 0.0
    %440 = vmatpush1.msra.mxu0 0.0
    %441 = vmatprep.subr.mxu0 0.0
    %442 = vmatpush1.msra.mxu0 0.0
    %443 = vmatprep.subr.mxu0 0.0
    %444 = vmatpush1.msra.mxu0 0.0
    %445 = vmatprep.subr.mxu0 0.0
    %446 = vmatpush1.msra.mxu0 0.0
    %447 = vmatprep.subr.mxu0 0.0
    %448 = vmatpush1.msra.mxu0 0.0
    %449 = vmatprep.subr.mxu0 0.0
    %450 = vmatpush1.msra.mxu0 0.0
    %451 = vmatprep.subr.mxu0 0.0
    %452 = vmatpush1.msra.mxu0 0.0
    %453 = vmatprep.subr.mxu0 0.0
    %454 = vmatpush1.msra.mxu0 0.0
    %455 = vmatprep.subr.mxu0 0.0
    %456 = vmatpush1.msra.mxu0 0.0
    %457 = vmatprep.subr.mxu0 0.0
    %458 = vmatpush1.msra.mxu0 0.0
    %459 = vmatprep.subr.mxu0 0.0
    %460 = vmatpush1.msra.mxu0 0.0
    %461 = vmatprep.subr.mxu0 0.0
    %462 = vmatpush1.msra.mxu0 0.0
    %463 = vmatprep.subr.mxu0 0.0
    %464 = vmatpush1.msra.mxu0 0.0
    %465 = vmatprep.subr.mxu0 0.0
    %466 = vmatpush1.msra.mxu0 0.0
    %467 = vmatprep.subr.mxu0 0.0
    %468 = vmatpush1.msra.mxu0 0.0
    %469 = vmatprep.subr.mxu0 0.0
    %470 = vmatpush1.msra.mxu0 0.0
    %471 = vmatprep.subr.mxu0 0.0
    %472 = vmatpush1.msra.mxu0 0.0
    %473 = vmatprep.subr.mxu0 0.0
    %474 = vmatpush1.msra.mxu0 0.0
    %475 = vmatprep.mubr.f32.mxu0 0.0
    %476 = vmatmul.mubr.f32.gmra.mrb[0].mxu0 %v409
    %v477 = vpop.f32.mrb[0].mxu0
    %v478 = vadd.f32 0.0, %v477
    %v479 = vpop.f32.mrb[0].mxu0
    %480 = vdwg.mxu0
    %482 = vrot.lane.b32.xlu0 %v478, 16
    %v483 = vpop.permute.xlu0 %482
    %v485 = vsel %vm153, %v313, %v483
    %v486 = vlaneseq
    %v487 = vshrl.u32 %v486, 7
    %v488 = vsub.s32 1, %v487
    %v489 = vrot.slane %v71, %v488
    %491 = vrot.lane.b32.xlu0 %v143, 96
    %v492 = vpop.permute.xlu0 %491
    %v493 = vsel %vm153, %v143, 0
    %v495 = vsel %vm153, %v492, 0
    %497 = vmatprep.subr.mxu0 0.0
    %498 = vmatpush1.xpose.msra.mxu0 %v495
    %499 = vmatprep.subr.mxu0 0.0
    %500 = vmatpush1.xpose.msra.mxu0 0.0
    %501 = vmatprep.subr.mxu0 0.0
    %502 = vmatpush1.xpose.msra.mxu0 0.0
    %503 = vmatprep.subr.mxu0 0.0
    %504 = vmatpush1.xpose.msra.mxu0 0.0
    %505 = vmatprep.subr.mxu0 0.0
    %506 = vmatpush1.xpose.msra.mxu0 0.0
    %507 = vmatprep.subr.mxu0 0.0
    %508 = vmatpush1.xpose.msra.mxu0 0.0
    %509 = vmatprep.subr.mxu0 0.0
    %510 = vmatpush1.xpose.msra.mxu0 0.0
    %511 = vmatprep.subr.mxu0 0.0
    %512 = vmatpush1.xpose.msra.mxu0 0.0
    %513 = vmatprep.subr.mxu0 0.0
    %514 = vmatpush1.xpose.msra.mxu0 0.0
    %515 = vmatprep.subr.mxu0 0.0
    %516 = vmatpush1.xpose.msra.mxu0 0.0
    %517 = vmatprep.subr.mxu0 0.0
    %518 = vmatpush1.xpose.msra.mxu0 0.0
    %519 = vmatprep.subr.mxu0 0.0
    %520 = vmatpush1.xpose.msra.mxu0 0.0
    %521 = vmatprep.subr.mxu0 0.0
    %522 = vmatpush1.xpose.msra.mxu0 0.0
    %523 = vmatprep.subr.mxu0 0.0
    %524 = vmatpush1.xpose.msra.mxu0 0.0
    %525 = vmatprep.subr.mxu0 0.0
    %526 = vmatpush1.xpose.msra.mxu0 0.0
    %527 = vmatprep.subr.mxu0 0.0
    %528 = vmatpush1.xpose.msra.mxu0 0.0
    %529 = vmatprep.subr.mxu0 0.0
    %530 = vmatpush1.xpose.msra.mxu0 0.0
    %531 = vmatprep.subr.mxu0 0.0
    %532 = vmatpush1.xpose.msra.mxu0 0.0
    %533 = vmatprep.subr.mxu0 0.0
    %534 = vmatpush1.xpose.msra.mxu0 0.0
    %535 = vmatprep.subr.mxu0 0.0
    %536 = vmatpush1.xpose.msra.mxu0 0.0
    %537 = vmatprep.subr.mxu0 0.0
    %538 = vmatpush1.xpose.msra.mxu0 0.0
    %539 = vmatprep.subr.mxu0 0.0
    %540 = vmatpush1.xpose.msra.mxu0 0.0
    %541 = vmatprep.subr.mxu0 0.0
    %542 = vmatpush1.xpose.msra.mxu0 0.0
    %543 = vmatprep.subr.mxu0 0.0
    %544 = vmatpush1.xpose.msra.mxu0 0.0
    %545 = vmatprep.subr.mxu0 0.0
    %546 = vmatpush1.xpose.msra.mxu0 0.0
    %547 = vmatprep.subr.mxu0 0.0
    %548 = vmatpush1.xpose.msra.mxu0 0.0
    %549 = vmatprep.subr.mxu0 0.0
    %550 = vmatpush1.xpose.msra.mxu0 0.0
    %551 = vmatprep.subr.mxu0 0.0
    %552 = vmatpush1.xpose.msra.mxu0 0.0
    %553 = vmatprep.subr.mxu0 0.0
    %554 = vmatpush1.xpose.msra.mxu0 0.0
    %555 = vmatprep.subr.mxu0 0.0
    %556 = vmatpush1.xpose.msra.mxu0 0.0
    %557 = vmatprep.subr.mxu0 0.0
    %558 = vmatpush1.xpose.msra.mxu0 0.0
    %559 = vmatprep.subr.mxu0 0.0
    %560 = vmatpush1.xpose.msra.mxu0 0.0
    %561 = vmatprep.mubr.f32.mxu0 0.0
    %562 = vmatmul.mubr.f32.gmra.mrb[0].mxu0 %v493
    %v563 = vpop.f32.mrb[0].mxu0
    %v564 = vadd.f32 %v489, %v563
    %v565 = vpop.f32.mrb[0].mxu0
    %566 = vdwg.mxu0
    %v567 = vsel %vm228, %v564, -inf
    %568 = vmax.xlane.f32.xlu0 %v567
    %v569 = vpop.xlane.xlu0 %568
    %v570 = vsub.f32 %v564, %v569
    %v571 = vmul.f32 %v570, 1.442695
    %v572 = vpow.pop %v571
    %v573 = vsel %vm228, %v572, 0.0
    %574 = vadd.xlane.f32.xlu0 %v573
    %v575 = vpop.xlane.xlu0 %574
    %v576 = vrcp.pop %v575
    %v577 = vmul.f32 %v572, %v576
    %578 = vrot.lane.b32.xlu0 %v143, 64
    %v579 = vpop.permute.xlu0 %578
    %v582 = vsel %vm228, %v577, 0
    %584 = vmatprep.subr.mxu0 0.0
    %585 = vmatpush1.msra.mxu0 %v579
    %586 = vmatprep.subr.mxu0 0.0
    %587 = vmatpush1.msra.mxu0 0.0
    %588 = vmatprep.subr.mxu0 0.0
    %589 = vmatpush1.msra.mxu0 0.0
    %590 = vmatprep.subr.mxu0 0.0
    %591 = vmatpush1.msra.mxu0 0.0
    %592 = vmatprep.subr.mxu0 0.0
    %593 = vmatpush1.msra.mxu0 0.0
    %594 = vmatprep.subr.mxu0 0.0
    %595 = vmatpush1.msra.mxu0 0.0
    %596 = vmatprep.subr.mxu0 0.0
    %597 = vmatpush1.msra.mxu0 0.0
    %598 = vmatprep.subr.mxu0 0.0
    %599 = vmatpush1.msra.mxu0 0.0
    %600 = vmatprep.subr.mxu0 0.0
    %601 = vmatpush1.msra.mxu0 0.0
    %602 = vmatprep.subr.mxu0 0.0
    %603 = vmatpush1.msra.mxu0 0.0
    %604 = vmatprep.subr.mxu0 0.0
    %605 = vmatpush1.msra.mxu0 0.0
    %606 = vmatprep.subr.mxu0 0.0
    %607 = vmatpush1.msra.mxu0 0.0
    %608 = vmatprep.subr.mxu0 0.0
    %609 = vmatpush1.msra.mxu0 0.0
    %610 = vmatprep.subr.mxu0 0.0
    %611 = vmatpush1.msra.mxu0 0.0
    %612 = vmatprep.subr.mxu0 0.0
    %613 = vmatpush1.msra.mxu0 0.0
    %614 = vmatprep.subr.mxu0 0.0
    %615 = vmatpush1.msra.mxu0 0.0
    %616 = vmatprep.subr.mxu0 0.0
    %617 = vmatpush1.msra.mxu0 0.0
    %618 = vmatprep.subr.mxu0 0.0
    %619 = vmatpush1.msra.mxu0 0.0
    %620 = vmatprep.subr.mxu0 0.0
    %621 = vmatpush1.msra.mxu0 0.0
    %622 = vmatprep.subr.mxu0 0.0
    %623 = vmatpush1.msra.mxu0 0.0
    %624 = vmatprep.subr.mxu0 0.0
    %625 = vmatpush1.msra.mxu0 0.0
    %626 = vmatprep.subr.mxu0 0.0
    %627 = vmatpush1.msra.mxu0 0.0
    %628 = vmatprep.subr.mxu0 0.0
    %629 = vmatpush1.msra.mxu0 0.0
    %630 = vmatprep.subr.mxu0 0.0
    %631 = vmatpush1.msra.mxu0 0.0
    %632 = vmatprep.subr.mxu0 0.0
    %633 = vmatpush1.msra.mxu0 0.0
    %634 = vmatprep.subr.mxu0 0.0
    %635 = vmatpush1.msra.mxu0 0.0
    %636 = vmatprep.subr.mxu0 0.0
    %637 = vmatpush1.msra.mxu0 0.0
    %638 = vmatprep.subr.mxu0 0.0
    %639 = vmatpush1.msra.mxu0 0.0
    %640 = vmatprep.subr.mxu0 0.0
    %641 = vmatpush1.msra.mxu0 0.0
    %642 = vmatprep.subr.mxu0 0.0
    %643 = vmatpush1.msra.mxu0 0.0
    %644 = vmatprep.subr.mxu0 0.0
    %645 = vmatpush1.msra.mxu0 0.0
    %646 = vmatprep.subr.mxu0 0.0
    %647 = vmatpush1.msra.mxu0 0.0
    %648 = vmatprep.mubr.f32.mxu0 0.0
    %649 = vmatmul.mubr.f32.gmra.mrb[0].mxu0 %v582
    %v650 = vpop.f32.mrb[0].mxu0
    %v651 = vadd.f32 0.0, %v650
    %v652 = vpop.f32.mrb[0].mxu0
    %653 = vdwg.mxu0
    %654 = vrot.lane.b32.xlu0 %v143, 112
    %v655 = vpop.permute.xlu0 %654
    %656 = vrot.lane.b32.xlu0 %v143, 80
    %v657 = vpop.permute.xlu0 %656
    %v658 = vsel %vm153, %v655, 0
    %v660 = vsel %vm153, %v657, 0
    %662 = vmatprep.subr.mxu0 0.0
    %663 = vmatpush1.xpose.msra.mxu0 %v660
    %664 = vmatprep.subr.mxu0 0.0
    %665 = vmatpush1.xpose.msra.mxu0 0.0
    %666 = vmatprep.subr.mxu0 0.0
    %667 = vmatpush1.xpose.msra.mxu0 0.0
    %668 = vmatprep.subr.mxu0 0.0
    %669 = vmatpush1.xpose.msra.mxu0 0.0
    %670 = vmatprep.subr.mxu0 0.0
    %671 = vmatpush1.xpose.msra.mxu0 0.0
    %672 = vmatprep.subr.mxu0 0.0
    %673 = vmatpush1.xpose.msra.mxu0 0.0
    %674 = vmatprep.subr.mxu0 0.0
    %675 = vmatpush1.xpose.msra.mxu0 0.0
    %676 = vmatprep.subr.mxu0 0.0
    %677 = vmatpush1.xpose.msra.mxu0 0.0
    %678 = vmatprep.subr.mxu0 0.0
    %679 = vmatpush1.xpose.msra.mxu0 0.0
    %680 = vmatprep.subr.mxu0 0.0
    %681 = vmatpush1.xpose.msra.mxu0 0.0
    %682 = vmatprep.subr.mxu0 0.0
    %683 = vmatpush1.xpose.msra.mxu0 0.0
    %684 = vmatprep.subr.mxu0 0.0
    %685 = vmatpush1.xpose.msra.mxu0 0.0
    %686 = vmatprep.subr.mxu0 0.0
    %687 = vmatpush1.xpose.msra.mxu0 0.0
    %688 = vmatprep.subr.mxu0 0.0
    %689 = vmatpush1.xpose.msra.mxu0 0.0
    %690 = vmatprep.subr.mxu0 0.0
    %691 = vmatpush1.xpose.msra.mxu0 0.0
    %692 = vmatprep.subr.mxu0 0.0
    %693 = vmatpush1.xpose.msra.mxu0 0.0
    %694 = vmatprep.subr.mxu0 0.0
    %695 = vmatpush1.xpose.msra.mxu0 0.0
    %696 = vmatprep.subr.mxu0 0.0
    %697 = vmatpush1.xpose.msra.mxu0 0.0
    %698 = vmatprep.subr.mxu0 0.0
    %699 = vmatpush1.xpose.msra.mxu0 0.0
    %700 = vmatprep.subr.mxu0 0.0
    %701 = vmatpush1.xpose.msra.mxu0 0.0
    %702 = vmatprep.subr.mxu0 0.0
    %703 = vmatpush1.xpose.msra.mxu0 0.0
    %704 = vmatprep.subr.mxu0 0.0
    %705 = vmatpush1.xpose.msra.mxu0 0.0
    %706 = vmatprep.subr.mxu0 0.0
    %707 = vmatpush1.xpose.msra.mxu0 0.0
    %708 = vmatprep.subr.mxu0 0.0
    %709 = vmatpush1.xpose.msra.mxu0 0.0
    %710 = vmatprep.subr.mxu0 0.0
    %711 = vmatpush1.xpose.msra.mxu0 0.0
    %712 = vmatprep.subr.mxu0 0.0
    %713 = vmatpush1.xpose.msra.mxu0 0.0
    %714 = vmatprep.subr.mxu0 0.0
    %715 = vmatpush1.xpose.msra.mxu0 0.0
    %716 = vmatprep.subr.mxu0 0.0
    %717 = vmatpush1.xpose.msra.mxu0 0.0
    %718 = vmatprep.subr.mxu0 0.0
    %719 = vmatpush1.xpose.msra.mxu0 0.0
    %720 = vmatprep.subr.mxu0 0.0
    %721 = vmatpush1.xpose.msra.mxu0 0.0
    %722 = vmatprep.subr.mxu0 0.0
    %723 = vmatpush1.xpose.msra.mxu0 0.0
    %724 = vmatprep.subr.mxu0 0.0
    %725 = vmatpush1.xpose.msra.mxu0 0.0
    %726 = vmatprep.mubr.f32.mxu0 0.0
    %727 = vmatmul.mubr.f32.gmra.mrb[0].mxu0 %v658
    %v728 = vpop.f32.mrb[0].mxu0
    %v729 = vadd.f32 %v489, %v728
    %v730 = vpop.f32.mrb[0].mxu0
    %731 = vdwg.mxu0
    %v732 = vsel %vm228, %v729, -inf
    %733 = vmax.xlane.f32.xlu0 %v732
    %v734 = vpop.xlane.xlu0 %733
    %v735 = vsub.f32 %v729, %v734
    %v736 = vmul.f32 %v735, 1.442695
    %v737 = vpow.pop %v736
    %v738 = vsel %vm228, %v737, 0.0
    %739 = vadd.xlane.f32.xlu0 %v738
    %v740 = vpop.xlane.xlu0 %739
    %v741 = vrcp.pop %v740
    %v742 = vmul.f32 %v737, %v741
    %743 = vrot.lane.b32.xlu0 %v143, 48
    %v744 = vpop.permute.xlu0 %743
    %v747 = vsel %vm228, %v742, 0
    %749 = vmatprep.subr.mxu0 0.0
    %750 = vmatpush1.msra.mxu0 %v744
    %751 = vmatprep.subr.mxu0 0.0
    %752 = vmatpush1.msra.mxu0 0.0
    %753 = vmatprep.subr.mxu0 0.0
    %754 = vmatpush1.msra.mxu0 0.0
    %755 = vmatprep.subr.mxu0 0.0
    %756 = vmatpush1.msra.mxu0 0.0
    %757 = vmatprep.subr.mxu0 0.0
    %758 = vmatpush1.msra.mxu0 0.0
    %759 = vmatprep.subr.mxu0 0.0
    %760 = vmatpush1.msra.mxu0 0.0
    %761 = vmatprep.subr.mxu0 0.0
    %762 = vmatpush1.msra.mxu0 0.0
    %763 = vmatprep.subr.mxu0 0.0
    %764 = vmatpush1.msra.mxu0 0.0
    %765 = vmatprep.subr.mxu0 0.0
    %766 = vmatpush1.msra.mxu0 0.0
    %767 = vmatprep.subr.mxu0 0.0
    %768 = vmatpush1.msra.mxu0 0.0
    %769 = vmatprep.subr.mxu0 0.0
    %770 = vmatpush1.msra.mxu0 0.0
    %771 = vmatprep.subr.mxu0 0.0
    %772 = vmatpush1.msra.mxu0 0.0
    %773 = vmatprep.subr.mxu0 0.0
    %774 = vmatpush1.msra.mxu0 0.0
    %775 = vmatprep.subr.mxu0 0.0
    %776 = vmatpush1.msra.mxu0 0.0
    %777 = vmatprep.subr.mxu0 0.0
    %778 = vmatpush1.msra.mxu0 0.0
    %779 = vmatprep.subr.mxu0 0.0
    %780 = vmatpush1.msra.mxu0 0.0
    %781 = vmatprep.subr.mxu0 0.0
    %782 = vmatpush1.msra.mxu0 0.0
    %783 = vmatprep.subr.mxu0 0.0
    %784 = vmatpush1.msra.mxu0 0.0
    %785 = vmatprep.subr.mxu0 0.0
    %786 = vmatpush1.msra.mxu0 0.0
    %787 = vmatprep.subr.mxu0 0.0
    %788 = vmatpush1.msra.mxu0 0.0
    %789 = vmatprep.subr.mxu0 0.0
    %790 = vmatpush1.msra.mxu0 0.0
    %791 = vmatprep.subr.mxu0 0.0
    %792 = vmatpush1.msra.mxu0 0.0
    %793 = vmatprep.subr.mxu0 0.0
    %794 = vmatpush1.msra.mxu0 0.0
    %795 = vmatprep.subr.mxu0 0.0
    %796 = vmatpush1.msra.mxu0 0.0
    %797 = vmatprep.subr.mxu0 0.0
    %798 = vmatpush1.msra.mxu0 0.0
    %799 = vmatprep.subr.mxu0 0.0
    %800 = vmatpush1.msra.mxu0 0.0
    %801 = vmatprep.subr.mxu0 0.0
    %802 = vmatpush1.msra.mxu0 0.0
    %803 = vmatprep.subr.mxu0 0.0
    %804 = vmatpush1.msra.mxu0 0.0
    %805 = vmatprep.subr.mxu0 0.0
    %806 = vmatpush1.msra.mxu0 0.0
    %807 = vmatprep.subr.mxu0 0.0
    %808 = vmatpush1.msra.mxu0 0.0
    %809 = vmatprep.subr.mxu0 0.0
    %810 = vmatpush1.msra.mxu0 0.0
    %811 = vmatprep.subr.mxu0 0.0
    %812 = vmatpush1.msra.mxu0 0.0
    %813 = vmatprep.mubr.f32.mxu0 0.0
    %814 = vmatmul.mubr.f32.gmra.mrb[0].mxu0 %v747
    %v815 = vpop.f32.mrb[0].mxu0
    %v816 = vadd.f32 0.0, %v815
    %v817 = vpop.f32.mrb[0].mxu0
    %818 = vdwg.mxu0
    %820 = vrot.lane.b32.xlu0 %v816, 16
    %v821 = vpop.permute.xlu0 %820
    %v823 = vsel %vm153, %v651, %v821
    %v824 = vpack.c.bf16 %v823, %v485
    %v825 = vlaneseq
    %v826 = vshrl.u32 %v825, 7
    %v827 = vsub.s32 1, %v826
    %v828 = vrot.slane %v84, %v827
    %829 = vrot.lane.b32.xlu0 %v98, 32
    %v830 = vpop.permute.xlu0 %829
    %831 = vrot.lane.b32.xlu0 %v99, 32
    %v832 = vpop.permute.xlu0 %831
    %v836 = vsel %vm31, %v824, 0
    %838 = vmatprep.subr.bf16.mxu0 0
    %839 = vmatpush1.bf16.msra.mxu0 %v830
    %840 = vmatprep.subr.bf16.mxu0 0
    %841 = vmatpush1.bf16.msra.mxu0 %v832
    %842 = vmatprep.subr.bf16.mxu0 0
    %843 = vmatpush1.bf16.msra.mxu0 0
    %844 = vmatprep.subr.bf16.mxu0 0
    %845 = vmatpush1.bf16.msra.mxu0 0
    %846 = vmatprep.subr.bf16.mxu0 0
    %847 = vmatpush1.bf16.msra.mxu0 0
    %848 = vmatprep.subr.bf16.mxu0 0
    %849 = vmatpush1.bf16.msra.mxu0 0
    %850 = vmatprep.subr.bf16.mxu0 0
    %851 = vmatpush1.bf16.msra.mxu0 0
    %852 = vmatprep.subr.bf16.mxu0 0
    %853 = vmatpush1.bf16.msra.mxu0 0
    %854 = vmatprep.subr.bf16.mxu0 0
    %855 = vmatpush1.bf16.msra.mxu0 0
    %856 = vmatprep.subr.bf16.mxu0 0
    %857 = vmatpush1.bf16.msra.mxu0 0
    %858 = vmatprep.subr.bf16.mxu0 0
    %859 = vmatpush1.bf16.msra.mxu0 0
    %860 = vmatprep.subr.bf16.mxu0 0
    %861 = vmatpush1.bf16.msra.mxu0 0
    %862 = vmatprep.subr.bf16.mxu0 0
    %863 = vmatpush1.bf16.msra.mxu0 0
    %864 = vmatprep.subr.bf16.mxu0 0
    %865 = vmatpush1.bf16.msra.mxu0 0
    %866 = vmatprep.subr.bf16.mxu0 0
    %867 = vmatpush1.bf16.msra.mxu0 0
    %868 = vmatprep.subr.bf16.mxu0 0
    %869 = vmatpush1.bf16.msra.mxu0 0
    %870 = vmatprep.mubr.bf16.mxu0 0
    %871 = vmatmul.mubr.bf16.gmra.mrb[0].mxu0 %v836
    %v872 = vpop.f32.mrb[0].mxu0
    %v873 = vadd.f32 %v828, %v872
    %v874 = vpop.f32.mrb[0].mxu0
    %v875 = vpop.f32.mrb[0].mxu0
    %v876 = vadd.f32 %v828, %v875
    %v877 = vpop.f32.mrb[0].mxu0
    %878 = vdwg.mxu0
    %v879 = vadd.f32 %v873, %v69
    %v880 = vadd.f32 %v876, %v70
    %v881 = vsel %vm31, %v879, 0.0
    %882 = vadd.xlane.f32.xlu0 %v881
    %v883 = vpop.xlane.xlu0 %882
    %v884 = vsel %vm31, %v880, 0.0
    %885 = vadd.xlane.f32.xlu0 %v884
    %v886 = vpop.xlane.xlu0 %885
    %v887 = vmul.f32 %v883, %v38
    %v888 = vmul.f32 %v886, %v38
    %v889 = vsub.f32 %v879, %v887
    %v890 = vsub.f32 %v880, %v888
    %v891 = vmul.f32 %v889, %v889
    %v892 = vmul.f32 %v890, %v890
    %v893 = vsel %vm31, %v891, 0.0
    %894 = vadd.xlane.f32.xlu0 %v893
    %v895 = vpop.xlane.xlu0 %894
    %v896 = vsel %vm31, %v892, 0.0
    %897 = vadd.xlane.f32.xlu0 %v896
    %v898 = vpop.xlane.xlu0 %897
    %v899 = vmul.f32 %v895, %v38
    %v900 = vmul.f32 %v898, %v38
    %v901 = vadd.f32 %v899, 1e-05
    %v902 = vadd.f32 %v900, 1e-05
    %v903 = vrsqrt.pop %v901
    %v904 = vrsqrt.pop %v902
    %v905 = vmul.f32 %v889, %v903
    %v906 = vmul.f32 %v890, %v904
    %v907 = vlaneseq
    %v908 = vshrl.u32 %v907, 7
    %v909 = vsub.s32 2, %v908
    %v910 = vrot.slane %v84, %v909
    %v911 = vmul.f32 %v905, %v910
    %v912 = vmul.f32 %v906, %v910
    %v913 = vlaneseq
    %v914 = vshrl.u32 %v913, 7
    %v915 = vsub.s32 3, %v914
    %v916 = vrot.slane %v84, %v915
    %v917 = vadd.f32 %v911, %v916
    %v918 = vadd.f32 %v912, %v916
    %v919 = vpack.c.bf16 %v918, %v917
    %v920 = vlaneseq
    %v921 = vshrl.u32 %v920, 7
    %v922 = vsub.s32 4, %v921
    %v923 = vrot.slane %v84, %v922
    %v924 = vunpack.c.h.b16 %v72
    %v925 = vunpack.c.h.b16 %v73
    %v926 = vunpack.c.h.b16 %v74
    %v927 = vunpack.c.h.b16 %v75
    %v928 = vpack.c.b16 %v925, %v924
    %v929 = vpack.c.b16 %v927, %v926
    %v933 = vsel %vm31, %v919, 0
    %935 = vmatprep.subr.bf16.mxu0 0
    %936 = vmatpush1.bf16.msra.mxu0 %v928
    %937 = vmatprep.subr.bf16.mxu0 0
    %938 = vmatpush1.bf16.msra.mxu0 %v929
    %939 = vmatprep.subr.bf16.mxu0 0
    %940 = vmatpush1.bf16.msra.mxu0 0
    %941 = vmatprep.subr.bf16.mxu0 0
    %942 = vmatpush1.bf16.msra.mxu0 0
    %943 = vmatprep.subr.bf16.mxu0 0
    %944 = vmatpush1.bf16.msra.mxu0 0
    %945 = vmatprep.subr.bf16.mxu0 0
    %946 = vmatpush1.bf16.msra.mxu0 0
    %947 = vmatprep.subr.bf16.mxu0 0
    %948 = vmatpush1.bf16.msra.mxu0 0
    %949 = vmatprep.subr.bf16.mxu0 0
    %950 = vmatpush1.bf16.msra.mxu0 0
    %951 = vmatprep.subr.bf16.mxu0 0
    %952 = vmatpush1.bf16.msra.mxu0 0
    %953 = vmatprep.subr.bf16.mxu0 0
    %954 = vmatpush1.bf16.msra.mxu0 0
    %955 = vmatprep.subr.bf16.mxu0 0
    %956 = vmatpush1.bf16.msra.mxu0 0
    %957 = vmatprep.subr.bf16.mxu0 0
    %958 = vmatpush1.bf16.msra.mxu0 0
    %959 = vmatprep.subr.bf16.mxu0 0
    %960 = vmatpush1.bf16.msra.mxu0 0
    %961 = vmatprep.subr.bf16.mxu0 0
    %962 = vmatpush1.bf16.msra.mxu0 0
    %963 = vmatprep.subr.bf16.mxu0 0
    %964 = vmatpush1.bf16.msra.mxu0 0
    %965 = vmatprep.subr.bf16.mxu0 0
    %966 = vmatpush1.bf16.msra.mxu0 0
    %967 = vmatprep.mubr.bf16.mxu0 0
    %968 = vmatmul.mubr.bf16.gmra.mrb[0].mxu0 %v933
    %v969 = vpop.f32.mrb[0].mxu0
    %v970 = vadd.f32 %v923, %v969
    %v971 = vpop.f32.mrb[0].mxu0
    %v972 = vpop.f32.mrb[0].mxu0
    %v973 = vadd.f32 %v923, %v972
    %v974 = vpop.f32.mrb[0].mxu0
    %975 = vdwg.mxu0
    %v976 = vmul.f32 %v970, 0.5
    %v977 = vmul.f32 %v973, 0.5
    %v978 = vmul.f32 %v970, 0.70710677
    %v979 = vmul.f32 %v973, 0.70710677
    %v980 = verf.f32.pop %v978
    %v981 = verf.f32.pop %v979
    %v982 = vadd.f32 %v980, 1.0
    %v983 = vadd.f32 %v981, 1.0
    %v984 = vmul.f32 %v976, %v982
    %v985 = vmul.f32 %v977, %v983
    %v986 = vpack.c.bf16 %v985, %v984
    %v987 = vlaneseq
    %v988 = vshrl.u32 %v987, 7
    %v989 = vsub.s32 5, %v988
    %v990 = vrot.slane %v84, %v989
    %v999 = vunpack.c.l.b16 %v76
    %v1000 = vunpack.c.l.b16 %v77
    %v1001 = vunpack.c.l.b16 %v78
    %v1002 = vunpack.c.l.b16 %v79
    %v1003 = vunpack.c.l.b16 %v80
    %v1004 = vunpack.c.l.b16 %v81
    %v1005 = vunpack.c.l.b16 %v82
    %v1006 = vunpack.c.l.b16 %v83
    %v1007 = vpack.c.b16 %v1000, %v999
    %v1008 = vpack.c.b16 %v1002, %v1001
    %v1009 = vpack.c.b16 %v1004, %v1003
    %v1010 = vpack.c.b16 %v1006, %v1005
    %vm1015 = vcmask 523264
    %v1017 = vsel %vm1015, %v986, 0
    %1019 = vmatprep.subr.bf16.mxu0 0
    %1020 = vmatpush1.bf16.msra.mxu0 %v1007
    %1021 = vmatprep.subr.bf16.mxu0 0
    %1022 = vmatpush1.bf16.msra.mxu0 %v1008
    %1023 = vmatprep.subr.bf16.mxu0 0
    %1024 = vmatpush1.bf16.msra.mxu0 %v1009
    %1025 = vmatprep.subr.bf16.mxu0 0
    %1026 = vmatpush1.bf16.msra.mxu0 %v1010
    %1027 = vmatprep.subr.bf16.mxu0 0
    %1028 = vmatpush1.bf16.msra.mxu0 0
    %1029 = vmatprep.subr.bf16.mxu0 0
    %1030 = vmatpush1.bf16.msra.mxu0 0
    %1031 = vmatprep.subr.bf16.mxu0 0
    %1032 = vmatpush1.bf16.msra.mxu0 0
    %1033 = vmatprep.subr.bf16.mxu0 0
    %1034 = vmatpush1.bf16.msra.mxu0 0
    %1035 = vmatprep.subr.bf16.mxu0 0
    %1036 = vmatpush1.bf16.msra.mxu0 0
    %1037 = vmatprep.subr.bf16.mxu0 0
    %1038 = vmatpush1.bf16.msra.mxu0 0
    %1039 = vmatprep.subr.bf16.mxu0 0
    %1040 = vmatpush1.bf16.msra.mxu0 0
    %1041 = vmatprep.subr.bf16.mxu0 0
    %1042 = vmatpush1.bf16.msra.mxu0 0
    %1043 = vmatprep.subr.bf16.mxu0 0
    %1044 = vmatpush1.bf16.msra.mxu0 0
    %1045 = vmatprep.subr.bf16.mxu0 0
    %1046 = vmatpush1.bf16.msra.mxu0 0
    %1047 = vmatprep.subr.bf16.mxu0 0
    %1048 = vmatpush1.bf16.msra.mxu0 0
    %1049 = vmatprep.subr.bf16.mxu0 0
    %1050 = vmatpush1.bf16.msra.mxu0 0
    %1051 = vmatprep.mubr.bf16.mxu0 0
    %1052 = vmatmul.mubr.bf16.gmra.mrb[0].mxu0 %v1017
    %v1053 = vpop.f32.mrb[0].mxu0
    %v1054 = vadd.f32 %v990, %v1053
    %v1055 = vpop.f32.mrb[0].mxu0
    %v1056 = vpop.f32.mrb[0].mxu0
    %v1057 = vadd.f32 %v990, %v1056
    %v1058 = vpop.f32.mrb[0].mxu0
    %1059 = vdwg.mxu0
    %v1060 = vadd.f32 %v1054, %v917
    %v1061 = vadd.f32 %v1057, %v918
    %v1062 = vsel %vm31, %v1060, 0.0
    %1063 = vadd.xlane.f32.xlu0 %v1062
    %v1064 = vpop.xlane.xlu0 %1063
    %v1065 = vsel %vm31, %v1061, 0.0
    %1066 = vadd.xlane.f32.xlu0 %v1065
    %v1067 = vpop.xlane.xlu0 %1066
    %v1068 = vmul.f32 %v1064, %v38
    %v1069 = vmul.f32 %v1067, %v38
    %v1070 = vsub.f32 %v1060, %v1068
    %v1071 = vsub.f32 %v1061, %v1069
    %v1072 = vmul.f32 %v1070, %v1070
    %v1073 = vmul.f32 %v1071, %v1071
    %v1074 = vsel %vm31, %v1072, 0.0
    %1075 = vadd.xlane.f32.xlu0 %v1074
    %v1076 = vpop.xlane.xlu0 %1075
    %v1077 = vsel %vm31, %v1073, 0.0
    %1078 = vadd.xlane.f32.xlu0 %v1077
    %v1079 = vpop.xlane.xlu0 %1078
    %v1080 = vmul.f32 %v1076, %v38
    %v1081 = vmul.f32 %v1079, %v38
    %v1082 = vadd.f32 %v1080, 1e-05
    %v1083 = vadd.f32 %v1081, 1e-05
    %v1084 = vrsqrt.pop %v1082
    %v1085 = vrsqrt.pop %v1083
    %v1086 = vmul.f32 %v1070, %v1084
    %v1087 = vmul.f32 %v1071, %v1085
    %v1088 = vlaneseq
    %v1089 = vshrl.u32 %v1088, 7
    %v1090 = vsub.s32 6, %v1089
    %v1091 = vrot.slane %v84, %v1090
    %v1092 = vmul.f32 %v1086, %v1091
    %v1093 = vmul.f32 %v1087, %v1091
    %v1094 = vlaneseq
    %v1095 = vshrl.u32 %v1094, 7
    %v1096 = vsub.s32 7, %v1095
    %v1097 = vrot.slane %v84, %v1096
    %v1098 = vadd.f32 %v1092, %v1097
    %v1099 = vadd.f32 %v1093, %v1097
    %s1100 = scalar_lea.vmem %s4, 32
    %v1101 = vld [vmem:[%s1100] sm:$0xff]
    %v1102 = vld [vmem:[%s1100 + $0x8] sm:$0xff]
    %v1103 = vld [vmem:[%s1100 + $0x10] sm:$0xff]
    %v1104 = vld [vmem:[%s1100 + $0x18] sm:$0xff]
    %s1105 = scalar_lea.vmem %s5, 32
    %v1106 = vld [vmem:[%s1105] sm:$0xf]
    %v1107 = vld [vmem:[%s1105 + $0x4] sm:$0xf]
    %v1108 = vld [vmem:[%s1105 + $0x8] sm:$0xf]
    %v1109 = vld [vmem:[%s1105 + $0xc] sm:$0xf]
    %v1110 = vld [vmem:[%s1105 + $0x10] sm:$0xf]
    %v1111 = vld [vmem:[%s1105 + $0x14] sm:$0xf]
    %v1112 = vld [vmem:[%s1105 + $0x18] sm:$0xf]
    %v1113 = vld [vmem:[%s1105 + $0x1c] sm:$0xf]
    %s1114 = scalar_lea.vmem %s3, 8
    %v1115 = vld [vmem:[%s1114] sm:$0xff]
    %v1116 = vpack.c.bf16 %v1099, %v1098
    %v1117 = vlaneseq
    %v1118 = vshrl.u32 %v1117, 7
    %v1119 = vsub.s32 0, %v1118
    %v1120 = vrot.slane %v1115, %v1119
    %v1125 = vunpack.c.l.b16 %v1101
    %v1126 = vunpack.c.l.b16 %v1102
    %v1127 = vunpack.c.l.b16 %v1103
    %v1128 = vunpack.c.l.b16 %v1104
    %v1129 = vpack.c.b16 %v1126, %v1125
    %v1130 = vpack.c.b16 %v1128, %v1127
    %v1134 = vsel %vm31, %v1116, 0
    %1136 = vmatprep.subr.bf16.mxu0 0
    %1137 = vmatpush1.bf16.msra.mxu0 %v1129
    %1138 = vmatprep.subr.bf16.mxu0 0
    %1139 = vmatpush1.bf16.msra.mxu0 %v1130
    %1140 = vmatprep.subr.bf16.mxu0 0
    %1141 = vmatpush1.bf16.msra.mxu0 0
    %1142 = vmatprep.subr.bf16.mxu0 0
    %1143 = vmatpush1.bf16.msra.mxu0 0
    %1144 = vmatprep.subr.bf16.mxu0 0
    %1145 = vmatpush1.bf16.msra.mxu0 0
    %1146 = vmatprep.subr.bf16.mxu0 0
    %1147 = vmatpush1.bf16.msra.mxu0 0
    %1148 = vmatprep.subr.bf16.mxu0 0
    %1149 = vmatpush1.bf16.msra.mxu0 0
    %1150 = vmatprep.subr.bf16.mxu0 0
    %1151 = vmatpush1.bf16.msra.mxu0 0
    %1152 = vmatprep.subr.bf16.mxu0 0
    %1153 = vmatpush1.bf16.msra.mxu0 0
    %1154 = vmatprep.subr.bf16.mxu0 0
    %1155 = vmatpush1.bf16.msra.mxu0 0
    %1156 = vmatprep.subr.bf16.mxu0 0
    %1157 = vmatpush1.bf16.msra.mxu0 0
    %1158 = vmatprep.subr.bf16.mxu0 0
    %1159 = vmatpush1.bf16.msra.mxu0 0
    %1160 = vmatprep.subr.bf16.mxu0 0
    %1161 = vmatpush1.bf16.msra.mxu0 0
    %1162 = vmatprep.subr.bf16.mxu0 0
    %1163 = vmatpush1.bf16.msra.mxu0 0
    %1164 = vmatprep.subr.bf16.mxu0 0
    %1165 = vmatpush1.bf16.msra.mxu0 0
    %1166 = vmatprep.subr.bf16.mxu0 0
    %1167 = vmatpush1.bf16.msra.mxu0 0
    %1168 = vmatprep.mubr.bf16.mxu0 0
    %1169 = vmatmul.mubr.bf16.gmra.mrb[0].mxu0 %v1134
    %v1170 = vpop.f32.mrb[0].mxu0
    %v1171 = vadd.f32 %v1120, %v1170
    %v1172 = vpop.f32.mrb[0].mxu0
    %v1173 = vpop.f32.mrb[0].mxu0
    %v1174 = vadd.f32 %v1120, %v1173
    %v1175 = vpop.f32.mrb[0].mxu0
    %1176 = vdwg.mxu0
    %1178 = vrot.lane.b32.xlu0 %v1171, 96
    %v1179 = vpop.permute.xlu0 %1178
    %v1180 = vsel %vm153, %v1171, 0
    %v1182 = vsel %vm153, %v1179, 0
    %1184 = vmatprep.subr.mxu0 0.0
    %1185 = vmatpush1.xpose.msra.mxu0 %v1182
    %1186 = vmatprep.subr.mxu0 0.0
    %1187 = vmatpush1.xpose.msra.mxu0 0.0
    %1188 = vmatprep.subr.mxu0 0.0
    %1189 = vmatpush1.xpose.msra.mxu0 0.0
    %1190 = vmatprep.subr.mxu0 0.0
    %1191 = vmatpush1.xpose.msra.mxu0 0.0
    %1192 = vmatprep.subr.mxu0 0.0
    %1193 = vmatpush1.xpose.msra.mxu0 0.0
    %1194 = vmatprep.subr.mxu0 0.0
    %1195 = vmatpush1.xpose.msra.mxu0 0.0
    %1196 = vmatprep.subr.mxu0 0.0
    %1197 = vmatpush1.xpose.msra.mxu0 0.0
    %1198 = vmatprep.subr.mxu0 0.0
    %1199 = vmatpush1.xpose.msra.mxu0 0.0
    %1200 = vmatprep.subr.mxu0 0.0
    %1201 = vmatpush1.xpose.msra.mxu0 0.0
    %1202 = vmatprep.subr.mxu0 0.0
    %1203 = vmatpush1.xpose.msra.mxu0 0.0
    %1204 = vmatprep.subr.mxu0 0.0
    %1205 = vmatpush1.xpose.msra.mxu0 0.0
    %1206 = vmatprep.subr.mxu0 0.0
    %1207 = vmatpush1.xpose.msra.mxu0 0.0
    %1208 = vmatprep.subr.mxu0 0.0
    %1209 = vmatpush1.xpose.msra.mxu0 0.0
    %1210 = vmatprep.subr.mxu0 0.0
    %1211 = vmatpush1.xpose.msra.mxu0 0.0
    %1212 = vmatprep.subr.mxu0 0.0
    %1213 = vmatpush1.xpose.msra.mxu0 0.0
    %1214 = vmatprep.subr.mxu0 0.0
    %1215 = vmatpush1.xpose.msra.mxu0 0.0
    %1216 = vmatprep.subr.mxu0 0.0
    %1217 = vmatpush1.xpose.msra.mxu0 0.0
    %1218 = vmatprep.subr.mxu0 0.0
    %1219 = vmatpush1.xpose.msra.mxu0 0.0
    %1220 = vmatprep.subr.mxu0 0.0
    %1221 = vmatpush1.xpose.msra.mxu0 0.0
    %1222 = vmatprep.subr.mxu0 0.0
    %1223 = vmatpush1.xpose.msra.mxu0 0.0
    %1224 = vmatprep.subr.mxu0 0.0
    %1225 = vmatpush1.xpose.msra.mxu0 0.0
    %1226 = vmatprep.subr.mxu0 0.0
    %1227 = vmatpush1.xpose.msra.mxu0 0.0
    %1228 = vmatprep.subr.mxu0 0.0
    %1229 = vmatpush1.xpose.msra.mxu0 0.0
    %1230 = vmatprep.subr.mxu0 0.0
    %1231 = vmatpush1.xpose.msra.mxu0 0.0
    %1232 = vmatprep.subr.mxu0 0.0
    %1233 = vmatpush1.xpose.msra.mxu0 0.0
    %1234 = vmatprep.subr.mxu0 0.0
    %1235 = vmatpush1.xpose.msra.mxu0 0.0
    %1236 = vmatprep.subr.mxu0 0.0
    %1237 = vmatpush1.xpose.msra.mxu0 0.0
    %1238 = vmatprep.subr.mxu0 0.0
    %1239 = vmatpush1.xpose.msra.mxu0 0.0
    %1240 = vmatprep.subr.mxu0 0.0
    %1241 = vmatpush1.xpose.msra.mxu0 0.0
    %1242 = vmatprep.subr.mxu0 0.0
    %1243 = vmatpush1.xpose.msra.mxu0 0.0
    %1244 = vmatprep.subr.mxu0 0.0
    %1245 = vmatpush1.xpose.msra.mxu0 0.0
    %1246 = vmatprep.subr.mxu0 0.0
    %1247 = vmatpush1.xpose.msra.mxu0 0.0
    %1248 = vmatprep.mubr.f32.mxu0 0.0
    %1249 = vmatmul.mubr.f32.gmra.mrb[0].mxu0 %v1180
    %v1250 = vpop.f32.mrb[0].mxu0
    %v1251 = vadd.f32 %v149, %v1250
    %v1252 = vpop.f32.mrb[0].mxu0
    %1253 = vdwg.mxu0
    %v1254 = vsel %vm228, %v1251, -inf
    %1255 = vmax.xlane.f32.xlu0 %v1254
    %v1256 = vpop.xlane.xlu0 %1255
    %v1257 = vsub.f32 %v1251, %v1256
    %v1258 = vmul.f32 %v1257, 1.442695
    %v1259 = vpow.pop %v1258
    %v1260 = vsel %vm228, %v1259, 0.0
    %1261 = vadd.xlane.f32.xlu0 %v1260
    %v1262 = vpop.xlane.xlu0 %1261
    %v1263 = vrcp.pop %v1262
    %v1264 = vmul.f32 %v1259, %v1263
    %1265 = vrot.lane.b32.xlu0 %v1171, 64
    %v1266 = vpop.permute.xlu0 %1265
    %v1269 = vsel %vm228, %v1264, 0
    %1271 = vmatprep.subr.mxu0 0.0
    %1272 = vmatpush1.msra.mxu0 %v1266
    %1273 = vmatprep.subr.mxu0 0.0
    %1274 = vmatpush1.msra.mxu0 0.0
    %1275 = vmatprep.subr.mxu0 0.0
    %1276 = vmatpush1.msra.mxu0 0.0
    %1277 = vmatprep.subr.mxu0 0.0
    %1278 = vmatpush1.msra.mxu0 0.0
    %1279 = vmatprep.subr.mxu0 0.0
    %1280 = vmatpush1.msra.mxu0 0.0
    %1281 = vmatprep.subr.mxu0 0.0
    %1282 = vmatpush1.msra.mxu0 0.0
    %1283 = vmatprep.subr.mxu0 0.0
    %1284 = vmatpush1.msra.mxu0 0.0
    %1285 = vmatprep.subr.mxu0 0.0
    %1286 = vmatpush1.msra.mxu0 0.0
    %1287 = vmatprep.subr.mxu0 0.0
    %1288 = vmatpush1.msra.mxu0 0.0
    %1289 = vmatprep.subr.mxu0 0.0
    %1290 = vmatpush1.msra.mxu0 0.0
    %1291 = vmatprep.subr.mxu0 0.0
    %1292 = vmatpush1.msra.mxu0 0.0
    %1293 = vmatprep.subr.mxu0 0.0
    %1294 = vmatpush1.msra.mxu0 0.0
    %1295 = vmatprep.subr.mxu0 0.0
    %1296 = vmatpush1.msra.mxu0 0.0
    %1297 = vmatprep.subr.mxu0 0.0
    %1298 = vmatpush1.msra.mxu0 0.0
    %1299 = vmatprep.subr.mxu0 0.0
    %1300 = vmatpush1.msra.mxu0 0.0
    %1301 = vmatprep.subr.mxu0 0.0
    %1302 = vmatpush1.msra.mxu0 0.0
    %1303 = vmatprep.subr.mxu0 0.0
    %1304 = vmatpush1.msra.mxu0 0.0
    %1305 = vmatprep.subr.mxu0 0.0
    %1306 = vmatpush1.msra.mxu0 0.0
    %1307 = vmatprep.subr.mxu0 0.0
    %1308 = vmatpush1.msra.mxu0 0.0
    %1309 = vmatprep.subr.mxu0 0.0
    %1310 = vmatpush1.msra.mxu0 0.0
    %1311 = vmatprep.subr.mxu0 0.0
    %1312 = vmatpush1.msra.mxu0 0.0
    %1313 = vmatprep.subr.mxu0 0.0
    %1314 = vmatpush1.msra.mxu0 0.0
    %1315 = vmatprep.subr.mxu0 0.0
    %1316 = vmatpush1.msra.mxu0 0.0
    %1317 = vmatprep.subr.mxu0 0.0
    %1318 = vmatpush1.msra.mxu0 0.0
    %1319 = vmatprep.subr.mxu0 0.0
    %1320 = vmatpush1.msra.mxu0 0.0
    %1321 = vmatprep.subr.mxu0 0.0
    %1322 = vmatpush1.msra.mxu0 0.0
    %1323 = vmatprep.subr.mxu0 0.0
    %1324 = vmatpush1.msra.mxu0 0.0
    %1325 = vmatprep.subr.mxu0 0.0
    %1326 = vmatpush1.msra.mxu0 0.0
    %1327 = vmatprep.subr.mxu0 0.0
    %1328 = vmatpush1.msra.mxu0 0.0
    %1329 = vmatprep.subr.mxu0 0.0
    %1330 = vmatpush1.msra.mxu0 0.0
    %1331 = vmatprep.subr.mxu0 0.0
    %1332 = vmatpush1.msra.mxu0 0.0
    %1333 = vmatprep.subr.mxu0 0.0
    %1334 = vmatpush1.msra.mxu0 0.0
    %1335 = vmatprep.mubr.f32.mxu0 0.0
    %1336 = vmatmul.mubr.f32.gmra.mrb[0].mxu0 %v1269
    %v1337 = vpop.f32.mrb[0].mxu0
    %v1338 = vadd.f32 0.0, %v1337
    %v1339 = vpop.f32.mrb[0].mxu0
    %1340 = vdwg.mxu0
    %1341 = vrot.lane.b32.xlu0 %v1171, 112
    %v1342 = vpop.permute.xlu0 %1341
    %1343 = vrot.lane.b32.xlu0 %v1171, 80
    %v1344 = vpop.permute.xlu0 %1343
    %v1345 = vsel %vm153, %v1342, 0
    %v1347 = vsel %vm153, %v1344, 0
    %1349 = vmatprep.subr.mxu0 0.0
    %1350 = vmatpush1.xpose.msra.mxu0 %v1347
    %1351 = vmatprep.subr.mxu0 0.0
    %1352 = vmatpush1.xpose.msra.mxu0 0.0
    %1353 = vmatprep.subr.mxu0 0.0
    %1354 = vmatpush1.xpose.msra.mxu0 0.0
    %1355 = vmatprep.subr.mxu0 0.0
    %1356 = vmatpush1.xpose.msra.mxu0 0.0
    %1357 = vmatprep.subr.mxu0 0.0
    %1358 = vmatpush1.xpose.msra.mxu0 0.0
    %1359 = vmatprep.subr.mxu0 0.0
    %1360 = vmatpush1.xpose.msra.mxu0 0.0
    %1361 = vmatprep.subr.mxu0 0.0
    %1362 = vmatpush1.xpose.msra.mxu0 0.0
    %1363 = vmatprep.subr.mxu0 0.0
    %1364 = vmatpush1.xpose.msra.mxu0 0.0
    %1365 = vmatprep.subr.mxu0 0.0
    %1366 = vmatpush1.xpose.msra.mxu0 0.0
    %1367 = vmatprep.subr.mxu0 0.0
    %1368 = vmatpush1.xpose.msra.mxu0 0.0
    %1369 = vmatprep.subr.mxu0 0.0
    %1370 = vmatpush1.xpose.msra.mxu0 0.0
    %1371 = vmatprep.subr.mxu0 0.0
    %1372 = vmatpush1.xpose.msra.mxu0 0.0
    %1373 = vmatprep.subr.mxu0 0.0
    %1374 = vmatpush1.xpose.msra.mxu0 0.0
    %1375 = vmatprep.subr.mxu0 0.0
    %1376 = vmatpush1.xpose.msra.mxu0 0.0
    %1377 = vmatprep.subr.mxu0 0.0
    %1378 = vmatpush1.xpose.msra.mxu0 0.0
    %1379 = vmatprep.subr.mxu0 0.0
    %1380 = vmatpush1.xpose.msra.mxu0 0.0
    %1381 = vmatprep.subr.mxu0 0.0
    %1382 = vmatpush1.xpose.msra.mxu0 0.0
    %1383 = vmatprep.subr.mxu0 0.0
    %1384 = vmatpush1.xpose.msra.mxu0 0.0
    %1385 = vmatprep.subr.mxu0 0.0
    %1386 = vmatpush1.xpose.msra.mxu0 0.0
    %1387 = vmatprep.subr.mxu0 0.0
    %1388 = vmatpush1.xpose.msra.mxu0 0.0
    %1389 = vmatprep.subr.mxu0 0.0
    %1390 = vmatpush1.xpose.msra.mxu0 0.0
    %1391 = vmatprep.subr.mxu0 0.0
    %1392 = vmatpush1.xpose.msra.mxu0 0.0
    %1393 = vmatprep.subr.mxu0 0.0
    %1394 = vmatpush1.xpose.msra.mxu0 0.0
    %1395 = vmatprep.subr.mxu0 0.0
    %1396 = vmatpush1.xpose.msra.mxu0 0.0
    %1397 = vmatprep.subr.mxu0 0.0
    %1398 = vmatpush1.xpose.msra.mxu0 0.0
    %1399 = vmatprep.subr.mxu0 0.0
    %1400 = vmatpush1.xpose.msra.mxu0 0.0
    %1401 = vmatprep.subr.mxu0 0.0
    %1402 = vmatpush1.xpose.msra.mxu0 0.0
    %1403 = vmatprep.subr.mxu0 0.0
    %1404 = vmatpush1.xpose.msra.mxu0 0.0
    %1405 = vmatprep.subr.mxu0 0.0
    %1406 = vmatpush1.xpose.msra.mxu0 0.0
    %1407 = vmatprep.subr.mxu0 0.0
    %1408 = vmatpush1.xpose.msra.mxu0 0.0
    %1409 = vmatprep.subr.mxu0 0.0
    %1410 = vmatpush1.xpose.msra.mxu0 0.0
    %1411 = vmatprep.subr.mxu0 0.0
    %1412 = vmatpush1.xpose.msra.mxu0 0.0
    %1413 = vmatprep.mubr.f32.mxu0 0.0
    %1414 = vmatmul.mubr.f32.gmra.mrb[0].mxu0 %v1345
    %v1415 = vpop.f32.mrb[0].mxu0
    %v1416 = vadd.f32 %v149, %v1415
    %v1417 = vpop.f32.mrb[0].mxu0
    %1418 = vdwg.mxu0
    %v1419 = vsel %vm228, %v1416, -inf
    %1420 = vmax.xlane.f32.xlu0 %v1419
    %v1421 = vpop.xlane.xlu0 %1420
    %v1422 = vsub.f32 %v1416, %v1421
    %v1423 = vmul.f32 %v1422, 1.442695
    %v1424 = vpow.pop %v1423
    %v1425 = vsel %vm228, %v1424, 0.0
    %1426 = vadd.xlane.f32.xlu0 %v1425
    %v1427 = vpop.xlane.xlu0 %1426
    %v1428 = vrcp.pop %v1427
    %v1429 = vmul.f32 %v1424, %v1428
    %1430 = vrot.lane.b32.xlu0 %v1171, 48
    %v1431 = vpop.permute.xlu0 %1430
    %v1434 = vsel %vm228, %v1429, 0
    %1436 = vmatprep.subr.mxu0 0.0
    %1437 = vmatpush1.msra.mxu0 %v1431
    %1438 = vmatprep.subr.mxu0 0.0
    %1439 = vmatpush1.msra.mxu0 0.0
    %1440 = vmatprep.subr.mxu0 0.0
    %1441 = vmatpush1.msra.mxu0 0.0
    %1442 = vmatprep.subr.mxu0 0.0
    %1443 = vmatpush1.msra.mxu0 0.0
    %1444 = vmatprep.subr.mxu0 0.0
    %1445 = vmatpush1.msra.mxu0 0.0
    %1446 = vmatprep.subr.mxu0 0.0
    %1447 = vmatpush1.msra.mxu0 0.0
    %1448 = vmatprep.subr.mxu0 0.0
    %1449 = vmatpush1.msra.mxu0 0.0
    %1450 = vmatprep.subr.mxu0 0.0
    %1451 = vmatpush1.msra.mxu0 0.0
    %1452 = vmatprep.subr.mxu0 0.0
    %1453 = vmatpush1.msra.mxu0 0.0
    %1454 = vmatprep.subr.mxu0 0.0
    %1455 = vmatpush1.msra.mxu0 0.0
    %1456 = vmatprep.subr.mxu0 0.0
    %1457 = vmatpush1.msra.mxu0 0.0
    %1458 = vmatprep.subr.mxu0 0.0
    %1459 = vmatpush1.msra.mxu0 0.0
    %1460 = vmatprep.subr.mxu0 0.0
    %1461 = vmatpush1.msra.mxu0 0.0
    %1462 = vmatprep.subr.mxu0 0.0
    %1463 = vmatpush1.msra.mxu0 0.0
    %1464 = vmatprep.subr.mxu0 0.0
    %1465 = vmatpush1.msra.mxu0 0.0
    %1466 = vmatprep.subr.mxu0 0.0
    %1467 = vmatpush1.msra.mxu0 0.0
    %1468 = vmatprep.subr.mxu0 0.0
    %1469 = vmatpush1.msra.mxu0 0.0
    %1470 = vmatprep.subr.mxu0 0.0
    %1471 = vmatpush1.msra.mxu0 0.0
    %1472 = vmatprep.subr.mxu0 0.0
    %1473 = vmatpush1.msra.mxu0 0.0
    %1474 = vmatprep.subr.mxu0 0.0
    %1475 = vmatpush1.msra.mxu0 0.0
    %1476 = vmatprep.subr.mxu0 0.0
    %1477 = vmatpush1.msra.mxu0 0.0
    %1478 = vmatprep.subr.mxu0 0.0
    %1479 = vmatpush1.msra.mxu0 0.0
    %1480 = vmatprep.subr.mxu0 0.0
    %1481 = vmatpush1.msra.mxu0 0.0
    %1482 = vmatprep.subr.mxu0 0.0
    %1483 = vmatpush1.msra.mxu0 0.0
    %1484 = vmatprep.subr.mxu0 0.0
    %1485 = vmatpush1.msra.mxu0 0.0
    %1486 = vmatprep.subr.mxu0 0.0
    %1487 = vmatpush1.msra.mxu0 0.0
    %1488 = vmatprep.subr.mxu0 0.0
    %1489 = vmatpush1.msra.mxu0 0.0
    %1490 = vmatprep.subr.mxu0 0.0
    %1491 = vmatpush1.msra.mxu0 0.0
    %1492 = vmatprep.subr.mxu0 0.0
    %1493 = vmatpush1.msra.mxu0 0.0
    %1494 = vmatprep.subr.mxu0 0.0
    %1495 = vmatpush1.msra.mxu0 0.0
    %1496 = vmatprep.subr.mxu0 0.0
    %1497 = vmatpush1.msra.mxu0 0.0
    %1498 = vmatprep.subr.mxu0 0.0
    %1499 = vmatpush1.msra.mxu0 0.0
    %1500 = vmatprep.mubr.f32.mxu0 0.0
    %1501 = vmatmul.mubr.f32.gmra.mrb[0].mxu0 %v1434
    %v1502 = vpop.f32.mrb[0].mxu0
    %v1503 = vadd.f32 0.0, %v1502
    %v1504 = vpop.f32.mrb[0].mxu0
    %1505 = vdwg.mxu0
    %1507 = vrot.lane.b32.xlu0 %v1503, 16
    %v1508 = vpop.permute.xlu0 %1507
    %v1510 = vsel %vm153, %v1338, %v1508
    %1512 = vrot.lane.b32.xlu0 %v1174, 96
    %v1513 = vpop.permute.xlu0 %1512
    %v1514 = vsel %vm153, %v1174, 0
    %v1516 = vsel %vm153, %v1513, 0
    %1518 = vmatprep.subr.mxu0 0.0
    %1519 = vmatpush1.xpose.msra.mxu0 %v1516
    %1520 = vmatprep.subr.mxu0 0.0
    %1521 = vmatpush1.xpose.msra.mxu0 0.0
    %1522 = vmatprep.subr.mxu0 0.0
    %1523 = vmatpush1.xpose.msra.mxu0 0.0
    %1524 = vmatprep.subr.mxu0 0.0
    %1525 = vmatpush1.xpose.msra.mxu0 0.0
    %1526 = vmatprep.subr.mxu0 0.0
    %1527 = vmatpush1.xpose.msra.mxu0 0.0
    %1528 = vmatprep.subr.mxu0 0.0
    %1529 = vmatpush1.xpose.msra.mxu0 0.0
    %1530 = vmatprep.subr.mxu0 0.0
    %1531 = vmatpush1.xpose.msra.mxu0 0.0
    %1532 = vmatprep.subr.mxu0 0.0
    %1533 = vmatpush1.xpose.msra.mxu0 0.0
    %1534 = vmatprep.subr.mxu0 0.0
    %1535 = vmatpush1.xpose.msra.mxu0 0.0
    %1536 = vmatprep.subr.mxu0 0.0
    %1537 = vmatpush1.xpose.msra.mxu0 0.0
    %1538 = vmatprep.subr.mxu0 0.0
    %1539 = vmatpush1.xpose.msra.mxu0 0.0
    %1540 = vmatprep.subr.mxu0 0.0
    %1541 = vmatpush1.xpose.msra.mxu0 0.0
    %1542 = vmatprep.subr.mxu0 0.0
    %1543 = vmatpush1.xpose.msra.mxu0 0.0
    %1544 = vmatprep.subr.mxu0 0.0
    %1545 = vmatpush1.xpose.msra.mxu0 0.0
    %1546 = vmatprep.subr.mxu0 0.0
    %1547 = vmatpush1.xpose.msra.mxu0 0.0
    %1548 = vmatprep.subr.mxu0 0.0
    %1549 = vmatpush1.xpose.msra.mxu0 0.0
    %1550 = vmatprep.subr.mxu0 0.0
    %1551 = vmatpush1.xpose.msra.mxu0 0.0
    %1552 = vmatprep.subr.mxu0 0.0
    %1553 = vmatpush1.xpose.msra.mxu0 0.0
    %1554 = vmatprep.subr.mxu0 0.0
    %1555 = vmatpush1.xpose.msra.mxu0 0.0
    %1556 = vmatprep.subr.mxu0 0.0
    %1557 = vmatpush1.xpose.msra.mxu0 0.0
    %1558 = vmatprep.subr.mxu0 0.0
    %1559 = vmatpush1.xpose.msra.mxu0 0.0
    %1560 = vmatprep.subr.mxu0 0.0
    %1561 = vmatpush1.xpose.msra.mxu0 0.0
    %1562 = vmatprep.subr.mxu0 0.0
    %1563 = vmatpush1.xpose.msra.mxu0 0.0
    %1564 = vmatprep.subr.mxu0 0.0
    %1565 = vmatpush1.xpose.msra.mxu0 0.0
    %1566 = vmatprep.subr.mxu0 0.0
    %1567 = vmatpush1.xpose.msra.mxu0 0.0
    %1568 = vmatprep.subr.mxu0 0.0
    %1569 = vmatpush1.xpose.msra.mxu0 0.0
    %1570 = vmatprep.subr.mxu0 0.0
    %1571 = vmatpush1.xpose.msra.mxu0 0.0
    %1572 = vmatprep.subr.mxu0 0.0
    %1573 = vmatpush1.xpose.msra.mxu0 0.0
    %1574 = vmatprep.subr.mxu0 0.0
    %1575 = vmatpush1.xpose.msra.mxu0 0.0
    %1576 = vmatprep.subr.mxu0 0.0
    %1577 = vmatpush1.xpose.msra.mxu0 0.0
    %1578 = vmatprep.subr.mxu0 0.0
    %1579 = vmatpush1.xpose.msra.mxu0 0.0
    %1580 = vmatprep.subr.mxu0 0.0
    %1581 = vmatpush1.xpose.msra.mxu0 0.0
    %1582 = vmatprep.mubr.f32.mxu0 0.0
    %1583 = vmatmul.mubr.f32.gmra.mrb[0].mxu0 %v1514
    %v1584 = vpop.f32.mrb[0].mxu0
    %v1585 = vadd.f32 %v489, %v1584
    %v1586 = vpop.f32.mrb[0].mxu0
    %1587 = vdwg.mxu0
    %v1588 = vsel %vm228, %v1585, -inf
    %1589 = vmax.xlane.f32.xlu0 %v1588
    %v1590 = vpop.xlane.xlu0 %1589
    %v1591 = vsub.f32 %v1585, %v1590
    %v1592 = vmul.f32 %v1591, 1.442695
    %v1593 = vpow.pop %v1592
    %v1594 = vsel %vm228, %v1593, 0.0
    %1595 = vadd.xlane.f32.xlu0 %v1594
    %v1596 = vpop.xlane.xlu0 %1595
    %v1597 = vrcp.pop %v1596
    %v1598 = vmul.f32 %v1593, %v1597
    %1599 = vrot.lane.b32.xlu0 %v1174, 64
    %v1600 = vpop.permute.xlu0 %1599
    %v1603 = vsel %vm228, %v1598, 0
    %1605 = vmatprep.subr.mxu0 0.0
    %1606 = vmatpush1.msra.mxu0 %v1600
    %1607 = vmatprep.subr.mxu0 0.0
    %1608 = vmatpush1.msra.mxu0 0.0
    %1609 = vmatprep.subr.mxu0 0.0
    %1610 = vmatpush1.msra.mxu0 0.0
    %1611 = vmatprep.subr.mxu0 0.0
    %1612 = vmatpush1.msra.mxu0 0.0
    %1613 = vmatprep.subr.mxu0 0.0
    %1614 = vmatpush1.msra.mxu0 0.0
    %1615 = vmatprep.subr.mxu0 0.0
    %1616 = vmatpush1.msra.mxu0 0.0
    %1617 = vmatprep.subr.mxu0 0.0
    %1618 = vmatpush1.msra.mxu0 0.0
    %1619 = vmatprep.subr.mxu0 0.0
    %1620 = vmatpush1.msra.mxu0 0.0
    %1621 = vmatprep.subr.mxu0 0.0
    %1622 = vmatpush1.msra.mxu0 0.0
    %1623 = vmatprep.subr.mxu0 0.0
    %1624 = vmatpush1.msra.mxu0 0.0
    %1625 = vmatprep.subr.mxu0 0.0
    %1626 = vmatpush1.msra.mxu0 0.0
    %1627 = vmatprep.subr.mxu0 0.0
    %1628 = vmatpush1.msra.mxu0 0.0
    %1629 = vmatprep.subr.mxu0 0.0
    %1630 = vmatpush1.msra.mxu0 0.0
    %1631 = vmatprep.subr.mxu0 0.0
    %1632 = vmatpush1.msra.mxu0 0.0
    %1633 = vmatprep.subr.mxu0 0.0
    %1634 = vmatpush1.msra.mxu0 0.0
    %1635 = vmatprep.subr.mxu0 0.0
    %1636 = vmatpush1.msra.mxu0 0.0
    %1637 = vmatprep.subr.mxu0 0.0
    %1638 = vmatpush1.msra.mxu0 0.0
    %1639 = vmatprep.subr.mxu0 0.0
    %1640 = vmatpush1.msra.mxu0 0.0
    %1641 = vmatprep.subr.mxu0 0.0
    %1642 = vmatpush1.msra.mxu0 0.0
    %1643 = vmatprep.subr.mxu0 0.0
    %1644 = vmatpush1.msra.mxu0 0.0
    %1645 = vmatprep.subr.mxu0 0.0
    %1646 = vmatpush1.msra.mxu0 0.0
    %1647 = vmatprep.subr.mxu0 0.0
    %1648 = vmatpush1.msra.mxu0 0.0
    %1649 = vmatprep.subr.mxu0 0.0
    %1650 = vmatpush1.msra.mxu0 0.0
    %1651 = vmatprep.subr.mxu0 0.0
    %1652 = vmatpush1.msra.mxu0 0.0
    %1653 = vmatprep.subr.mxu0 0.0
    %1654 = vmatpush1.msra.mxu0 0.0
    %1655 = vmatprep.subr.mxu0 0.0
    %1656 = vmatpush1.msra.mxu0 0.0
    %1657 = vmatprep.subr.mxu0 0.0
    %1658 = vmatpush1.msra.mxu0 0.0
    %1659 = vmatprep.subr.mxu0 0.0
    %1660 = vmatpush1.msra.mxu0 0.0
    %1661 = vmatprep.subr.mxu0 0.0
    %1662 = vmatpush1.msra.mxu0 0.0
    %1663 = vmatprep.subr.mxu0 0.0
    %1664 = vmatpush1.msra.mxu0 0.0
    %1665 = vmatprep.subr.mxu0 0.0
    %1666 = vmatpush1.msra.mxu0 0.0
    %1667 = vmatprep.subr.mxu0 0.0
    %1668 = vmatpush1.msra.mxu0 0.0
    %1669 = vmatprep.mubr.f32.mxu0 0.0
    %1670 = vmatmul.mubr.f32.gmra.mrb[0].mxu0 %v1603
    %v1671 = vpop.f32.mrb[0].mxu0
    %v1672 = vadd.f32 0.0, %v1671
    %v1673 = vpop.f32.mrb[0].mxu0
    %1674 = vdwg.mxu0
    %1675 = vrot.lane.b32.xlu0 %v1174, 112
    %v1676 = vpop.permute.xlu0 %1675
    %1677 = vrot.lane.b32.xlu0 %v1174, 80
    %v1678 = vpop.permute.xlu0 %1677
    %v1679 = vsel %vm153, %v1676, 0
    %v1681 = vsel %vm153, %v1678, 0
    %1683 = vmatprep.subr.mxu0 0.0
    %1684 = vmatpush1.xpose.msra.mxu0 %v1681
    %1685 = vmatprep.subr.mxu0 0.0
    %1686 = vmatpush1.xpose.msra.mxu0 0.0
    %1687 = vmatprep.subr.mxu0 0.0
    %1688 = vmatpush1.xpose.msra.mxu0 0.0
    %1689 = vmatprep.subr.mxu0 0.0
    %1690 = vmatpush1.xpose.msra.mxu0 0.0
    %1691 = vmatprep.subr.mxu0 0.0
    %1692 = vmatpush1.xpose.msra.mxu0 0.0
    %1693 = vmatprep.subr.mxu0 0.0
    %1694 = vmatpush1.xpose.msra.mxu0 0.0
    %1695 = vmatprep.subr.mxu0 0.0
    %1696 = vmatpush1.xpose.msra.mxu0 0.0
    %1697 = vmatprep.subr.mxu0 0.0
    %1698 = vmatpush1.xpose.msra.mxu0 0.0
    %1699 = vmatprep.subr.mxu0 0.0
    %1700 = vmatpush1.xpose.msra.mxu0 0.0
    %1701 = vmatprep.subr.mxu0 0.0
    %1702 = vmatpush1.xpose.msra.mxu0 0.0
    %1703 = vmatprep.subr.mxu0 0.0
    %1704 = vmatpush1.xpose.msra.mxu0 0.0
    %1705 = vmatprep.subr.mxu0 0.0
    %1706 = vmatpush1.xpose.msra.mxu0 0.0
    %1707 = vmatprep.subr.mxu0 0.0
    %1708 = vmatpush1.xpose.msra.mxu0 0.0
    %1709 = vmatprep.subr.mxu0 0.0
    %1710 = vmatpush1.xpose.msra.mxu0 0.0
    %1711 = vmatprep.subr.mxu0 0.0
    %1712 = vmatpush1.xpose.msra.mxu0 0.0
    %1713 = vmatprep.subr.mxu0 0.0
    %1714 = vmatpush1.xpose.msra.mxu0 0.0
    %1715 = vmatprep.subr.mxu0 0.0
    %1716 = vmatpush1.xpose.msra.mxu0 0.0
    %1717 = vmatprep.subr.mxu0 0.0
    %1718 = vmatpush1.xpose.msra.mxu0 0.0
    %1719 = vmatprep.subr.mxu0 0.0
    %1720 = vmatpush1.xpose.msra.mxu0 0.0
    %1721 = vmatprep.subr.mxu0 0.0
    %1722 = vmatpush1.xpose.msra.mxu0 0.0
    %1723 = vmatprep.subr.mxu0 0.0
    %1724 = vmatpush1.xpose.msra.mxu0 0.0
    %1725 = vmatprep.subr.mxu0 0.0
    %1726 = vmatpush1.xpose.msra.mxu0 0.0
    %1727 = vmatprep.subr.mxu0 0.0
    %1728 = vmatpush1.xpose.msra.mxu0 0.0
    %1729 = vmatprep.subr.mxu0 0.0
    %1730 = vmatpush1.xpose.msra.mxu0 0.0
    %1731 = vmatprep.subr.mxu0 0.0
    %1732 = vmatpush1.xpose.msra.mxu0 0.0
    %1733 = vmatprep.subr.mxu0 0.0
    %1734 = vmatpush1.xpose.msra.mxu0 0.0
    %1735 = vmatprep.subr.mxu0 0.0
    %1736 = vmatpush1.xpose.msra.mxu0 0.0
    %1737 = vmatprep.subr.mxu0 0.0
    %1738 = vmatpush1.xpose.msra.mxu0 0.0
    %1739 = vmatprep.subr.mxu0 0.0
    %1740 = vmatpush1.xpose.msra.mxu0 0.0
    %1741 = vmatprep.subr.mxu0 0.0
    %1742 = vmatpush1.xpose.msra.mxu0 0.0
    %1743 = vmatprep.subr.mxu0 0.0
    %1744 = vmatpush1.xpose.msra.mxu0 0.0
    %1745 = vmatprep.subr.mxu0 0.0
    %1746 = vmatpush1.xpose.msra.mxu0 0.0
    %1747 = vmatprep.mubr.f32.mxu0 0.0
    %1748 = vmatmul.mubr.f32.gmra.mrb[0].mxu0 %v1679
    %v1749 = vpop.f32.mrb[0].mxu0
    %v1750 = vadd.f32 %v489, %v1749
    %v1751 = vpop.f32.mrb[0].mxu0
    %1752 = vdwg.mxu0
    %v1753 = vsel %vm228, %v1750, -inf
    %1754 = vmax.xlane.f32.xlu0 %v1753
    %v1755 = vpop.xlane.xlu0 %1754
    %v1756 = vsub.f32 %v1750, %v1755
    %v1757 = vmul.f32 %v1756, 1.442695
    %v1758 = vpow.pop %v1757
    %v1759 = vsel %vm228, %v1758, 0.0
    %1760 = vadd.xlane.f32.xlu0 %v1759
    %v1761 = vpop.xlane.xlu0 %1760
    %v1762 = vrcp.pop %v1761
    %v1763 = vmul.f32 %v1758, %v1762
    %1764 = vrot.lane.b32.xlu0 %v1174, 48
    %v1765 = vpop.permute.xlu0 %1764
    %v1768 = vsel %vm228, %v1763, 0
    %1770 = vmatprep.subr.mxu0 0.0
    %1771 = vmatpush1.msra.mxu0 %v1765
    %1772 = vmatprep.subr.mxu0 0.0
    %1773 = vmatpush1.msra.mxu0 0.0
    %1774 = vmatprep.subr.mxu0 0.0
    %1775 = vmatpush1.msra.mxu0 0.0
    %1776 = vmatprep.subr.mxu0 0.0
    %1777 = vmatpush1.msra.mxu0 0.0
    %1778 = vmatprep.subr.mxu0 0.0
    %1779 = vmatpush1.msra.mxu0 0.0
    %1780 = vmatprep.subr.mxu0 0.0
    %1781 = vmatpush1.msra.mxu0 0.0
    %1782 = vmatprep.subr.mxu0 0.0
    %1783 = vmatpush1.msra.mxu0 0.0
    %1784 = vmatprep.subr.mxu0 0.0
    %1785 = vmatpush1.msra.mxu0 0.0
    %1786 = vmatprep.subr.mxu0 0.0
    %1787 = vmatpush1.msra.mxu0 0.0
    %1788 = vmatprep.subr.mxu0 0.0
    %1789 = vmatpush1.msra.mxu0 0.0
    %1790 = vmatprep.subr.mxu0 0.0
    %1791 = vmatpush1.msra.mxu0 0.0
    %1792 = vmatprep.subr.mxu0 0.0
    %1793 = vmatpush1.msra.mxu0 0.0
    %1794 = vmatprep.subr.mxu0 0.0
    %1795 = vmatpush1.msra.mxu0 0.0
    %1796 = vmatprep.subr.mxu0 0.0
    %1797 = vmatpush1.msra.mxu0 0.0
    %1798 = vmatprep.subr.mxu0 0.0
    %1799 = vmatpush1.msra.mxu0 0.0
    %1800 = vmatprep.subr.mxu0 0.0
    %1801 = vmatpush1.msra.mxu0 0.0
    %1802 = vmatprep.subr.mxu0 0.0
    %1803 = vmatpush1.msra.mxu0 0.0
    %1804 = vmatprep.subr.mxu0 0.0
    %1805 = vmatpush1.msra.mxu0 0.0
    %1806 = vmatprep.subr.mxu0 0.0
    %1807 = vmatpush1.msra.mxu0 0.0
    %1808 = vmatprep.subr.mxu0 0.0
    %1809 = vmatpush1.msra.mxu0 0.0
    %1810 = vmatprep.subr.mxu0 0.0
    %1811 = vmatpush1.msra.mxu0 0.0
    %1812 = vmatprep.subr.mxu0 0.0
    %1813 = vmatpush1.msra.mxu0 0.0
    %1814 = vmatprep.subr.mxu0 0.0
    %1815 = vmatpush1.msra.mxu0 0.0
    %1816 = vmatprep.subr.mxu0 0.0
    %1817 = vmatpush1.msra.mxu0 0.0
    %1818 = vmatprep.subr.mxu0 0.0
    %1819 = vmatpush1.msra.mxu0 0.0
    %1820 = vmatprep.subr.mxu0 0.0
    %1821 = vmatpush1.msra.mxu0 0.0
    %1822 = vmatprep.subr.mxu0 0.0
    %1823 = vmatpush1.msra.mxu0 0.0
    %1824 = vmatprep.subr.mxu0 0.0
    %1825 = vmatpush1.msra.mxu0 0.0
    %1826 = vmatprep.subr.mxu0 0.0
    %1827 = vmatpush1.msra.mxu0 0.0
    %1828 = vmatprep.subr.mxu0 0.0
    %1829 = vmatpush1.msra.mxu0 0.0
    %1830 = vmatprep.subr.mxu0 0.0
    %1831 = vmatpush1.msra.mxu0 0.0
    %1832 = vmatprep.subr.mxu0 0.0
    %1833 = vmatpush1.msra.mxu0 0.0
    %1834 = vmatprep.mubr.f32.mxu0 0.0
    %1835 = vmatmul.mubr.f32.gmra.mrb[0].mxu0 %v1768
    %v1836 = vpop.f32.mrb[0].mxu0
    %v1837 = vadd.f32 0.0, %v1836
    %v1838 = vpop.f32.mrb[0].mxu0
    %1839 = vdwg.mxu0
    %1841 = vrot.lane.b32.xlu0 %v1837, 16
    %v1842 = vpop.permute.xlu0 %1841
    %v1844 = vsel %vm153, %v1672, %v1842
    %v1845 = vpack.c.bf16 %v1844, %v1510
    %v1846 = vlaneseq
    %v1847 = vshrl.u32 %v1846, 7
    %v1848 = vsub.s32 1, %v1847
    %v1849 = vrot.slane %v1115, %v1848
    %1850 = vrot.lane.b32.xlu0 %v1129, 32
    %v1851 = vpop.permute.xlu0 %1850
    %1852 = vrot.lane.b32.xlu0 %v1130, 32
    %v1853 = vpop.permute.xlu0 %1852
    %v1857 = vsel %vm31, %v1845, 0
    %1859 = vmatprep.subr.bf16.mxu0 0
    %1860 = vmatpush1.bf16.msra.mxu0 %v1851
    %1861 = vmatprep.subr.bf16.mxu0 0
    %1862 = vmatpush1.bf16.msra.mxu0 %v1853
    %1863 = vmatprep.subr.bf16.mxu0 0
    %1864 = vmatpush1.bf16.msra.mxu0 0
    %1865 = vmatprep.subr.bf16.mxu0 0
    %1866 = vmatpush1.bf16.msra.mxu0 0
    %1867 = vmatprep.subr.bf16.mxu0 0
    %1868 = vmatpush1.bf16.msra.mxu0 0
    %1869 = vmatprep.subr.bf16.mxu0 0
    %1870 = vmatpush1.bf16.msra.mxu0 0
    %1871 = vmatprep.subr.bf16.mxu0 0
    %1872 = vmatpush1.bf16.msra.mxu0 0
    %1873 = vmatprep.subr.bf16.mxu0 0
    %1874 = vmatpush1.bf16.msra.mxu0 0
    %1875 = vmatprep.subr.bf16.mxu0 0
    %1876 = vmatpush1.bf16.msra.mxu0 0
    %1877 = vmatprep.subr.bf16.mxu0 0
    %1878 = vmatpush1.bf16.msra.mxu0 0
    %1879 = vmatprep.subr.bf16.mxu0 0
    %1880 = vmatpush1.bf16.msra.mxu0 0
    %1881 = vmatprep.subr.bf16.mxu0 0
    %1882 = vmatpush1.bf16.msra.mxu0 0
    %1883 = vmatprep.subr.bf16.mxu0 0
    %1884 = vmatpush1.bf16.msra.mxu0 0
    %1885 = vmatprep.subr.bf16.mxu0 0
    %1886 = vmatpush1.bf16.msra.mxu0 0
    %1887 = vmatprep.subr.bf16.mxu0 0
    %1888 = vmatpush1.bf16.msra.mxu0 0
    %1889 = vmatprep.subr.bf16.mxu0 0
    %1890 = vmatpush1.bf16.msra.mxu0 0
    %1891 = vmatprep.mubr.bf16.mxu0 0
    %1892 = vmatmul.mubr.bf16.gmra.mrb[0].mxu0 %v1857
    %v1893 = vpop.f32.mrb[0].mxu0
    %v1894 = vadd.f32 %v1849, %v1893
    %v1895 = vpop.f32.mrb[0].mxu0
    %v1896 = vpop.f32.mrb[0].mxu0
    %v1897 = vadd.f32 %v1849, %v1896
    %v1898 = vpop.f32.mrb[0].mxu0
    %1899 = vdwg.mxu0
    %v1900 = vadd.f32 %v1894, %v1098
    %v1901 = vadd.f32 %v1897, %v1099
    %v1902 = vsel %vm31, %v1900, 0.0
    %1903 = vadd.xlane.f32.xlu0 %v1902
    %v1904 = vpop.xlane.xlu0 %1903
    %v1905 = vsel %vm31, %v1901, 0.0
    %1906 = vadd.xlane.f32.xlu0 %v1905
    %v1907 = vpop.xlane.xlu0 %1906
    %v1908 = vmul.f32 %v1904, %v38
    %v1909 = vmul.f32 %v1907, %v38
    %v1910 = vsub.f32 %v1900, %v1908
    %v1911 = vsub.f32 %v1901, %v1909
    %v1912 = vmul.f32 %v1910, %v1910
    %v1913 = vmul.f32 %v1911, %v1911
    %v1914 = vsel %vm31, %v1912, 0.0
    %1915 = vadd.xlane.f32.xlu0 %v1914
    %v1916 = vpop.xlane.xlu0 %1915
    %v1917 = vsel %vm31, %v1913, 0.0
    %1918 = vadd.xlane.f32.xlu0 %v1917
    %v1919 = vpop.xlane.xlu0 %1918
    %v1920 = vmul.f32 %v1916, %v38
    %v1921 = vmul.f32 %v1919, %v38
    %v1922 = vadd.f32 %v1920, 1e-05
    %v1923 = vadd.f32 %v1921, 1e-05
    %v1924 = vrsqrt.pop %v1922
    %v1925 = vrsqrt.pop %v1923
    %v1926 = vmul.f32 %v1910, %v1924
    %v1927 = vmul.f32 %v1911, %v1925
    %v1928 = vlaneseq
    %v1929 = vshrl.u32 %v1928, 7
    %v1930 = vsub.s32 2, %v1929
    %v1931 = vrot.slane %v1115, %v1930
    %v1932 = vmul.f32 %v1926, %v1931
    %v1933 = vmul.f32 %v1927, %v1931
    %v1934 = vlaneseq
    %v1935 = vshrl.u32 %v1934, 7
    %v1936 = vsub.s32 3, %v1935
    %v1937 = vrot.slane %v1115, %v1936
    %v1938 = vadd.f32 %v1932, %v1937
    %v1939 = vadd.f32 %v1933, %v1937
    %v1940 = vpack.c.bf16 %v1939, %v1938
    %v1941 = vlaneseq
    %v1942 = vshrl.u32 %v1941, 7
    %v1943 = vsub.s32 4, %v1942
    %v1944 = vrot.slane %v1115, %v1943
    %v1945 = vunpack.c.h.b16 %v1101
    %v1946 = vunpack.c.h.b16 %v1102
    %v1947 = vunpack.c.h.b16 %v1103
    %v1948 = vunpack.c.h.b16 %v1104
    %v1949 = vpack.c.b16 %v1946, %v1945
    %v1950 = vpack.c.b16 %v1948, %v1947
    %v1954 = vsel %vm31, %v1940, 0
    %1956 = vmatprep.subr.bf16.mxu0 0
    %1957 = vmatpush1.bf16.msra.mxu0 %v1949
    %1958 = vmatprep.subr.bf16.mxu0 0
    %1959 = vmatpush1.bf16.msra.mxu0 %v1950
    %1960 = vmatprep.subr.bf16.mxu0 0
    %1961 = vmatpush1.bf16.msra.mxu0 0
    %1962 = vmatprep.subr.bf16.mxu0 0
    %1963 = vmatpush1.bf16.msra.mxu0 0
    %1964 = vmatprep.subr.bf16.mxu0 0
    %1965 = vmatpush1.bf16.msra.mxu0 0
    %1966 = vmatprep.subr.bf16.mxu0 0
    %1967 = vmatpush1.bf16.msra.mxu0 0
    %1968 = vmatprep.subr.bf16.mxu0 0
    %1969 = vmatpush1.bf16.msra.mxu0 0
    %1970 = vmatprep.subr.bf16.mxu0 0
    %1971 = vmatpush1.bf16.msra.mxu0 0
    %1972 = vmatprep.subr.bf16.mxu0 0
    %1973 = vmatpush1.bf16.msra.mxu0 0
    %1974 = vmatprep.subr.bf16.mxu0 0
    %1975 = vmatpush1.bf16.msra.mxu0 0
    %1976 = vmatprep.subr.bf16.mxu0 0
    %1977 = vmatpush1.bf16.msra.mxu0 0
    %1978 = vmatprep.subr.bf16.mxu0 0
    %1979 = vmatpush1.bf16.msra.mxu0 0
    %1980 = vmatprep.subr.bf16.mxu0 0
    %1981 = vmatpush1.bf16.msra.mxu0 0
    %1982 = vmatprep.subr.bf16.mxu0 0
    %1983 = vmatpush1.bf16.msra.mxu0 0
    %1984 = vmatprep.subr.bf16.mxu0 0
    %1985 = vmatpush1.bf16.msra.mxu0 0
    %1986 = vmatprep.subr.bf16.mxu0 0
    %1987 = vmatpush1.bf16.msra.mxu0 0
    %1988 = vmatprep.mubr.bf16.mxu0 0
    %1989 = vmatmul.mubr.bf16.gmra.mrb[0].mxu0 %v1954
    %v1990 = vpop.f32.mrb[0].mxu0
    %v1991 = vadd.f32 %v1944, %v1990
    %v1992 = vpop.f32.mrb[0].mxu0
    %v1993 = vpop.f32.mrb[0].mxu0
    %v1994 = vadd.f32 %v1944, %v1993
    %v1995 = vpop.f32.mrb[0].mxu0
    %1996 = vdwg.mxu0
    %v1997 = vmul.f32 %v1991, 0.5
    %v1998 = vmul.f32 %v1994, 0.5
    %v1999 = vmul.f32 %v1991, 0.70710677
    %v2000 = vmul.f32 %v1994, 0.70710677
    %v2001 = verf.f32.pop %v1999
    %v2002 = verf.f32.pop %v2000
    %v2003 = vadd.f32 %v2001, 1.0
    %v2004 = vadd.f32 %v2002, 1.0
    %v2005 = vmul.f32 %v1997, %v2003
    %v2006 = vmul.f32 %v1998, %v2004
    %v2007 = vpack.c.bf16 %v2006, %v2005
    %v2008 = vlaneseq
    %v2009 = vshrl.u32 %v2008, 7
    %v2010 = vsub.s32 5, %v2009
    %v2011 = vrot.slane %v1115, %v2010
    %v2020 = vunpack.c.l.b16 %v1106
    %v2021 = vunpack.c.l.b16 %v1107
    %v2022 = vunpack.c.l.b16 %v1108
    %v2023 = vunpack.c.l.b16 %v1109
    %v2024 = vunpack.c.l.b16 %v1110
    %v2025 = vunpack.c.l.b16 %v1111
    %v2026 = vunpack.c.l.b16 %v1112
    %v2027 = vunpack.c.l.b16 %v1113
    %v2028 = vpack.c.b16 %v2021, %v2020
    %v2029 = vpack.c.b16 %v2023, %v2022
    %v2030 = vpack.c.b16 %v2025, %v2024
    %v2031 = vpack.c.b16 %v2027, %v2026
    %v2037 = vsel %vm1015, %v2007, 0
    %2039 = vmatprep.subr.bf16.mxu0 0
    %2040 = vmatpush1.bf16.msra.mxu0 %v2028
    %2041 = vmatprep.subr.bf16.mxu0 0
    %2042 = vmatpush1.bf16.msra.mxu0 %v2029
    %2043 = vmatprep.subr.bf16.mxu0 0
    %2044 = vmatpush1.bf16.msra.mxu0 %v2030
    %2045 = vmatprep.subr.bf16.mxu0 0
    %2046 = vmatpush1.bf16.msra.mxu0 %v2031
    %2047 = vmatprep.subr.bf16.mxu0 0
    %2048 = vmatpush1.bf16.msra.mxu0 0
    %2049 = vmatprep.subr.bf16.mxu0 0
    %2050 = vmatpush1.bf16.msra.mxu0 0
    %2051 = vmatprep.subr.bf16.mxu0 0
    %2052 = vmatpush1.bf16.msra.mxu0 0
    %2053 = vmatprep.subr.bf16.mxu0 0
    %2054 = vmatpush1.bf16.msra.mxu0 0
    %2055 = vmatprep.subr.bf16.mxu0 0
    %2056 = vmatpush1.bf16.msra.mxu0 0
    %2057 = vmatprep.subr.bf16.mxu0 0
    %2058 = vmatpush1.bf16.msra.mxu0 0
    %2059 = vmatprep.subr.bf16.mxu0 0
    %2060 = vmatpush1.bf16.msra.mxu0 0
    %2061 = vmatprep.subr.bf16.mxu0 0
    %2062 = vmatpush1.bf16.msra.mxu0 0
    %2063 = vmatprep.subr.bf16.mxu0 0
    %2064 = vmatpush1.bf16.msra.mxu0 0
    %2065 = vmatprep.subr.bf16.mxu0 0
    %2066 = vmatpush1.bf16.msra.mxu0 0
    %2067 = vmatprep.subr.bf16.mxu0 0
    %2068 = vmatpush1.bf16.msra.mxu0 0
    %2069 = vmatprep.subr.bf16.mxu0 0
    %2070 = vmatpush1.bf16.msra.mxu0 0
    %2071 = vmatprep.mubr.bf16.mxu0 0
    %2072 = vmatmul.mubr.bf16.gmra.mrb[0].mxu0 %v2037
    %v2073 = vpop.f32.mrb[0].mxu0
    %v2074 = vadd.f32 %v2011, %v2073
    %v2075 = vpop.f32.mrb[0].mxu0
    %v2076 = vpop.f32.mrb[0].mxu0
    %v2077 = vadd.f32 %v2011, %v2076
    %v2078 = vpop.f32.mrb[0].mxu0
    %2079 = vdwg.mxu0
    %v2080 = vadd.f32 %v2074, %v1938
    %v2081 = vadd.f32 %v2077, %v1939
    %v2082 = vsel %vm31, %v2080, 0.0
    %2083 = vadd.xlane.f32.xlu0 %v2082
    %v2084 = vpop.xlane.xlu0 %2083
    %v2085 = vsel %vm31, %v2081, 0.0
    %2086 = vadd.xlane.f32.xlu0 %v2085
    %v2087 = vpop.xlane.xlu0 %2086
    %v2088 = vmul.f32 %v2084, %v38
    %v2089 = vmul.f32 %v2087, %v38
    %v2090 = vsub.f32 %v2080, %v2088
    %v2091 = vsub.f32 %v2081, %v2089
    %v2092 = vmul.f32 %v2090, %v2090
    %v2093 = vmul.f32 %v2091, %v2091
    %v2094 = vsel %vm31, %v2092, 0.0
    %2095 = vadd.xlane.f32.xlu0 %v2094
    %v2096 = vpop.xlane.xlu0 %2095
    %v2097 = vsel %vm31, %v2093, 0.0
    %2098 = vadd.xlane.f32.xlu0 %v2097
    %v2099 = vpop.xlane.xlu0 %2098
    %v2100 = vmul.f32 %v2096, %v38
    %v2101 = vmul.f32 %v2099, %v38
    %v2102 = vadd.f32 %v2100, 1e-05
    %v2103 = vadd.f32 %v2101, 1e-05
    %v2104 = vrsqrt.pop %v2102
    %v2105 = vrsqrt.pop %v2103
    %v2106 = vmul.f32 %v2090, %v2104
    %v2107 = vmul.f32 %v2091, %v2105
    %v2108 = vlaneseq
    %v2109 = vshrl.u32 %v2108, 7
    %v2110 = vsub.s32 6, %v2109
    %v2111 = vrot.slane %v1115, %v2110
    %v2112 = vmul.f32 %v2106, %v2111
    %v2113 = vmul.f32 %v2107, %v2111
    %v2114 = vlaneseq
    %v2115 = vshrl.u32 %v2114, 7
    %v2116 = vsub.s32 7, %v2115
    %v2117 = vrot.slane %v1115, %v2116
    %v2118 = vadd.f32 %v2112, %v2117
    %v2119 = vadd.f32 %v2113, %v2117
    %v2121 = vrot.slane %v2119, 7
    %vm2123 = vcmask 1040384
    %v2124 = vsel %vm2123, %v2118, %v2121
    %v2125 = vld [vmem:[%s6] sm:$0xff]
    %v2126 = vld [vmem:[%s6 + $0x8] sm:$0xff]
    %v2127 = vld [vmem:[%s6 + $0x10] sm:$0xff]
    %v2128 = vld [vmem:[%s6 + $0x18] sm:$0xff]
    %v2129 = vpack.c.bf16 %v2124, %v2124
    %v2130 = vlaneseq
    %v2131 = vshrl.u32 %v2130, 7
    %v2132 = vsub.s32 2, %v2131
    %v2133 = vrot.slane %v28, %v2132
    %v2138 = vunpack.c.l.b16 %v2125
    %v2139 = vunpack.c.l.b16 %v2126
    %v2140 = vunpack.c.l.b16 %v2127
    %v2141 = vunpack.c.l.b16 %v2128
    %v2142 = vpack.c.b16 %v2139, %v2138
    %v2143 = vpack.c.b16 %v2141, %v2140
    %v2147 = vsel %vm31, %v2129, 0
    %2149 = vmatprep.subr.bf16.mxu0 0
    %2150 = vmatpush1.bf16.msra.mxu0 %v2142
    %2151 = vmatprep.subr.bf16.mxu0 0
    %2152 = vmatpush1.bf16.msra.mxu0 %v2143
    %2153 = vmatprep.subr.bf16.mxu0 0
    %2154 = vmatpush1.bf16.msra.mxu0 0
    %2155 = vmatprep.subr.bf16.mxu0 0
    %2156 = vmatpush1.bf16.msra.mxu0 0
    %2157 = vmatprep.subr.bf16.mxu0 0
    %2158 = vmatpush1.bf16.msra.mxu0 0
    %2159 = vmatprep.subr.bf16.mxu0 0
    %2160 = vmatpush1.bf16.msra.mxu0 0
    %2161 = vmatprep.subr.bf16.mxu0 0
    %2162 = vmatpush1.bf16.msra.mxu0 0
    %2163 = vmatprep.subr.bf16.mxu0 0
    %2164 = vmatpush1.bf16.msra.mxu0 0
    %2165 = vmatprep.subr.bf16.mxu0 0
    %2166 = vmatpush1.bf16.msra.mxu0 0
    %2167 = vmatprep.subr.bf16.mxu0 0
    %2168 = vmatpush1.bf16.msra.mxu0 0
    %2169 = vmatprep.subr.bf16.mxu0 0
    %2170 = vmatpush1.bf16.msra.mxu0 0
    %2171 = vmatprep.subr.bf16.mxu0 0
    %2172 = vmatpush1.bf16.msra.mxu0 0
    %2173 = vmatprep.subr.bf16.mxu0 0
    %2174 = vmatpush1.bf16.msra.mxu0 0
    %2175 = vmatprep.subr.bf16.mxu0 0
    %2176 = vmatpush1.bf16.msra.mxu0 0
    %2177 = vmatprep.subr.bf16.mxu0 0
    %2178 = vmatpush1.bf16.msra.mxu0 0
    %2179 = vmatprep.subr.bf16.mxu0 0
    %2180 = vmatpush1.bf16.msra.mxu0 0
    %2181 = vmatprep.mubr.bf16.mxu0 0
    %2182 = vmatmul.mubr.bf16.gmra.mrb[0].mxu0 %v2147
    %v2183 = vpop.f32.mrb[0].mxu0
    %v2184 = vadd.f32 %v2133, %v2183
    %v2185 = vpop.f32.mrb[0].mxu0
    %v2186 = vpop.f32.mrb[0].mxu0
    %v2187 = vpop.f32.mrb[0].mxu0
    %2188 = vdwg.mxu0
    %v2189 = vtanh.pop %v2184
    %v2190 = vpack.c.bf16 %v2189, %v2189
    %v2191 = vlaneseq
    %v2192 = vshrl.u32 %v2191, 7
    %v2193 = vsub.s32 3, %v2192
    %v2194 = vrot.slane %v28, %v2193
    %v2195 = vunpack.c.h.b16 %v2125
    %v2196 = vunpack.c.h.b16 %v2126
    %v2197 = vunpack.c.h.b16 %v2127
    %v2198 = vunpack.c.h.b16 %v2128
    %v2199 = vpack.c.b16 %v2196, %v2195
    %v2200 = vpack.c.b16 %v2198, %v2197
    %2201 = vrot.lane.b32.xlu0 %v2142, 96
    %v2202 = vpop.permute.xlu0 %2201
    %2203 = vrot.lane.b32.xlu0 %v2199, 96
    %v2204 = vpop.permute.xlu0 %2203
    %2205 = vrot.lane.b32.xlu0 %v2143, 96
    %v2206 = vpop.permute.xlu0 %2205
    %2207 = vrot.lane.b32.xlu0 %v2200, 96
    %v2208 = vpop.permute.xlu0 %2207
    %vm2209 = vcmask 785408
    %v2210 = vsel %vm2209, %v2202, %v2204
    %v2211 = vsel %vm2209, %v2206, %v2208
    %v2215 = vsel %vm31, %v2190, 0
    %2217 = vmatprep.subr.bf16.mxu0 0
    %2218 = vmatpush1.bf16.msra.mxu0 %v2210
    %2219 = vmatprep.subr.bf16.mxu0 0
    %2220 = vmatpush1.bf16.msra.mxu0 %v2211
    %2221 = vmatprep.subr.bf16.mxu0 0
    %2222 = vmatpush1.bf16.msra.mxu0 0
    %2223 = vmatprep.subr.bf16.mxu0 0
    %2224 = vmatpush1.bf16.msra.mxu0 0
    %2225 = vmatprep.subr.bf16.mxu0 0
    %2226 = vmatpush1.bf16.msra.mxu0 0
    %2227 = vmatprep.subr.bf16.mxu0 0
    %2228 = vmatpush1.bf16.msra.mxu0 0
    %2229 = vmatprep.subr.bf16.mxu0 0
    %2230 = vmatpush1.bf16.msra.mxu0 0
    %2231 = vmatprep.subr.bf16.mxu0 0
    %2232 = vmatpush1.bf16.msra.mxu0 0
    %2233 = vmatprep.subr.bf16.mxu0 0
    %2234 = vmatpush1.bf16.msra.mxu0 0
    %2235 = vmatprep.subr.bf16.mxu0 0
    %2236 = vmatpush1.bf16.msra.mxu0 0
    %2237 = vmatprep.subr.bf16.mxu0 0
    %2238 = vmatpush1.bf16.msra.mxu0 0
    %2239 = vmatprep.subr.bf16.mxu0 0
    %2240 = vmatpush1.bf16.msra.mxu0 0
    %2241 = vmatprep.subr.bf16.mxu0 0
    %2242 = vmatpush1.bf16.msra.mxu0 0
    %2243 = vmatprep.subr.bf16.mxu0 0
    %2244 = vmatpush1.bf16.msra.mxu0 0
    %2245 = vmatprep.subr.bf16.mxu0 0
    %2246 = vmatpush1.bf16.msra.mxu0 0
    %2247 = vmatprep.subr.bf16.mxu0 0
    %2248 = vmatpush1.bf16.msra.mxu0 0
    %2249 = vmatprep.mubr.bf16.mxu0 0
    %2250 = vmatmul.mubr.bf16.gmra.mrb[0].mxu0 %v2215
    %v2251 = vpop.f32.mrb[0].mxu0
    %v2252 = vadd.f32 %v2194, %v2251
    %v2253 = vpop.f32.mrb[0].mxu0
    %v2254 = vpop.f32.mrb[0].mxu0
    %v2255 = vpop.f32.mrb[0].mxu0
    %2256 = vdwg.mxu0
    %2257 = vst [vmem:[#allocation2] sm:$0x3] %v2252
    // Predicated region
    $region30: #{roberta_classifier_forward.1} parent=1 // pred_check
      _
    $region31: #{roberta_classifier_forward.1} parent=1 // pred_check_branch
      %2259 = sbr.rel (0) target = $region33
    $region32: #{roberta_classifier_forward.1} parent=1 // pred_region
      %s2261 = ssub.s32 32, 32
      %2262 = vsyncadd [#allocation3], %s2261
      %s2264 = sshll.u32 [#allocation2], 4
      %s2265 = int_to_ptr.vmem [resolvable:$true] %s2264
      %2267 = dma.vmem_to_hbm [thread:$0]  %s2265, 32, %s7, [#allocation3]
    $region33: #{roberta_classifier_forward.1} parent=1 // pred_fallthru
      _
    // Predicated region
    $region34: #{roberta_classifier_forward.1} parent=1 // pred_check
      _
    $region35: #{roberta_classifier_forward.1} parent=1 // pred_check_branch
      %2269 = sbr.rel (0) target = $region37
    $region36: #{roberta_classifier_forward.1} parent=1 // pred_region
      %2270 = dma.done [#allocation3], 32
    $region37: #{roberta_classifier_forward.1} parent=1 // pred_fallthru
      _
    %2271 = vsyncpa [#allocation3], 1

</llo_original>
